<compile_context>
chip_gen: v7x
topology: tpu7x:2x2x1
jax: 0.10.0
libtpu: 0.0.40
codegen_flags: <defaults>
</compile_context>

<pallas_src>
import jax
import jax.numpy as jnp
from jax import lax
from jax.experimental import pallas as pl
from jax.experimental.pallas import tpu as pltpu


def gcn_classifier_kernel(counts_ref,                       # SMEM, scalar-prefetched
                          a_ref, x_ref,                     # per-graph blocks
                          w1_ref, b1_ref, w2_ref, b2_ref,
                          w3_ref, b3_ref, w4_ref, b4_ref,
                          wc_ref, bc_ref,
                          logits_ref, hg_ref):
    g = pl.program_id(0)
    a = a_ref[...]                       # (N_PAD, N_PAD) bf16 normalized adjacency
    h = x_ref[...]                       # (N_PAD, F_PAD) f32 node features

    def graph_conv_relu(h, w_ref, b_ref):
        # GraphConv(norm='both'): aggregate then project (F_in <= F_out for all
        # layers here). Both matmuls run on the MXU in bf16 with f32
        # accumulation; bias + ReLU stay on the VPU in f32.
        agg = jnp.dot(a, h.astype(jnp.bfloat16),
                      preferred_element_type=jnp.float32)
        z = jnp.dot(agg.astype(jnp.bfloat16), w_ref[...],
                    preferred_element_type=jnp.float32) + b_ref[...]
        return jnp.maximum(z, 0.0)

    h = graph_conv_relu(h, w1_ref, b1_ref)
    h = graph_conv_relu(h, w2_ref, b2_ref)
    h = graph_conv_relu(h, w3_ref, b3_ref)
    h = graph_conv_relu(h, w4_ref, b4_ref)

    # dgl.mean_nodes: per-graph mean over *valid* node rows only. Padded rows
    # hold relu(bias) (never pollute valid rows since their A columns are 0),
    # so mask them out of the reduction with the prefetched node count.
    n_nodes = counts_ref[g]
    row_ids = lax.broadcasted_iota(jnp.int32, h.shape, 0)
    h_valid = jnp.where(row_ids < n_nodes, h, 0.0)
    hg = jnp.sum(h_valid, axis=0, keepdims=True) / n_nodes.astype(jnp.float32)
    hg_ref[...] = hg                                         # (1, H_PAD) f32

    # self.classify(hg): Linear(hidden_dim, n_classes) on padded lanes.
    logits_ref[...] = (jnp.dot(hg.astype(jnp.bfloat16), wc_ref[...],
                               preferred_element_type=jnp.float32)
                       + bc_ref[...])                        # (1, C_PAD) f32


def gcn_classifier(a_norm_b, x_b, counts, params, *, hidden, n_classes):
    """Batched forward pass: one grid step per graph, everything VMEM-resident."""
    G, N_PAD, _ = a_norm_b.shape
    F_PAD = x_b.shape[-1]
    H_PAD = params["w1"].shape[1]
    C_PAD = params["wc"].shape[1]

    def resident(shape):
        # Weights/biases: same block every grid step (stays resident in VMEM).
        nd = len(shape)
        return pl.BlockSpec(shape, lambda g, c, _nd=nd: (0,) * _nd)

    grid_spec = pltpu.PrefetchScalarGridSpec(
        num_scalar_prefetch=1,                 # per-graph node counts -> SMEM
        grid=(G,),
        in_specs=[
            pl.BlockSpec((None, N_PAD, N_PAD), lambda g, c: (g, 0, 0)),   # A_norm
            pl.BlockSpec((None, N_PAD, F_PAD), lambda g, c: (g, 0, 0)),   # X
            resident((F_PAD, H_PAD)), resident((1, H_PAD)),               # w1, b1
            resident((H_PAD, H_PAD)), resident((1, H_PAD)),               # w2, b2
            resident((H_PAD, H_PAD)), resident((1, H_PAD)),               # w3, b3
            resident((H_PAD, H_PAD)), resident((1, H_PAD)),               # w4, b4
            resident((H_PAD, C_PAD)), resident((1, C_PAD)),               # wc, bc
        ],
        out_specs=(
            pl.BlockSpec((None, 1, C_PAD), lambda g, c: (g, 0, 0)),       # logits
            pl.BlockSpec((None, 1, H_PAD), lambda g, c: (g, 0, 0)),       # hg
        ),
    )

    logits_p, hg_p = pl.pallas_call(
        gcn_classifier_kernel,
        out_shape=(jax.ShapeDtypeStruct((G, 1, C_PAD), jnp.float32),
                   jax.ShapeDtypeStruct((G, 1, H_PAD), jnp.float32)),
        grid_spec=grid_spec,
        compiler_params=pltpu.CompilerParams(
            dimension_semantics=("parallel",),          # shard graphs across TCs
            vmem_limit_bytes=32 * 1024 * 1024),
    )(counts, a_norm_b, x_b,
      params["w1"], params["b1"], params["w2"], params["b2"],
      params["w3"], params["b3"], params["w4"], params["b4"],
      params["wc"], params["bc"])

    # Strip lane padding back off.
    return (logits_p.reshape(G, C_PAD)[:, :n_classes],
            hg_p.reshape(G, H_PAD)[:, :hidden])


def _glorot(key, shape):
    fan_in, fan_out = shape
    lim = (6.0 / (fan_in + fan_out)) ** 0.5
    return jax.random.uniform(key, shape, jnp.float32, -lim, lim)


def _pad2(m, rows, cols):
    return jnp.zeros((rows, cols), m.dtype).at[:m.shape[0], :m.shape[1]].set(m)


if __name__ == "__main__":
    # Small deterministic batch of graphs (true sizes), padded to lane-dense
    # shapes for the kernel.
    G = 4
    in_dim, hidden, n_classes = 8, 32, 4
    N_PAD = F_PAD = H_PAD = C_PAD = 128
    node_counts = [16, 12, 20, 9]

    key = jax.random.PRNGKey(0)
    graph_keys = jax.random.split(key, G + 1)
    param_keys = jax.random.split(graph_keys[G], 10)

    a_b = jnp.zeros((G, N_PAD, N_PAD), jnp.float32)
    x_b = jnp.zeros((G, N_PAD, F_PAD), jnp.float32)
    a_list, x_list = [], []
    for gi, n in enumerate(node_counts):
        ka, kx = jax.random.split(graph_keys[gi], 2)
        adj = (jax.random.uniform(ka, (n, n)) < 0.3).astype(jnp.float32)
        # DGL GraphConv norm='both' normalization, degrees clamped to >= 1.
        out_deg = jnp.maximum(adj.sum(axis=0), 1.0)   # out-degree of source nodes
        in_deg = jnp.maximum(adj.sum(axis=1), 1.0)    # in-degree of destination nodes
        a_norm = (in_deg[:, None] ** -0.5) * adj * (out_deg[None, :] ** -0.5)
        x = jax.random.normal(kx, (n, in_dim), jnp.float32)
        a_b = a_b.at[gi, :n, :n].set(a_norm)
        x_b = x_b.at[gi, :n, :in_dim].set(x)
        a_list.append(a_norm)
        x_list.append(x)
    counts = jnp.array(node_counts, jnp.int32)

    # True-size parameters (nonzero conv biases so the padded-row mask matters).
    w1 = _glorot(param_keys[0], (in_dim, hidden))
    w2 = _glorot(param_keys[2], (hidden, hidden))
    w3 = _glorot(param_keys[4], (hidden, hidden))
    w4 = _glorot(param_keys[6], (hidden, hidden))
    wc = _glorot(param_keys[8], (hidden, n_classes))
    b1 = jax.random.uniform(param_keys[1], (1, hidden), jnp.float32, -0.1, 0.1)
    b2 = jax.random.uniform(param_keys[3], (1, hidden), jnp.float32, -0.1, 0.1)
    b3 = jax.random.uniform(param_keys[5], (1, hidden), jnp.float32, -0.1, 0.1)
    b4 = jax.random.uniform(param_keys[7], (1, hidden), jnp.float32, -0.1, 0.1)
    bc = jax.random.uniform(param_keys[9], (1, n_classes), jnp.float32, -0.1, 0.1)

    # Padded, bf16 weights + bf16 adjacency for the MXU; biases stay f32.
    params = {
        "w1": _pad2(w1, F_PAD, H_PAD).astype(jnp.bfloat16), "b1": _pad2(b1, 1, H_PAD),
        "w2": _pad2(w2, H_PAD, H_PAD).astype(jnp.bfloat16), "b2": _pad2(b2, 1, H_PAD),
        "w3": _pad2(w3, H_PAD, H_PAD).astype(jnp.bfloat16), "b3": _pad2(b3, 1, H_PAD),
        "w4": _pad2(w4, H_PAD, H_PAD).astype(jnp.bfloat16), "b4": _pad2(b4, 1, H_PAD),
        "wc": _pad2(wc, H_PAD, C_PAD).astype(jnp.bfloat16), "bc": _pad2(bc, 1, C_PAD),
    }

    logits, hg = gcn_classifier(a_b.astype(jnp.bfloat16), x_b, counts, params,
                                hidden=hidden, n_classes=n_classes)
    jax.block_until_ready((logits, hg))

    # Pure-JAX reference (f32 math, bf16-rounded A / W to match kernel storage).
    ws_r = [w.astype(jnp.bfloat16).astype(jnp.float32) for w in (w1, w2, w3, w4)]
    bs = [b1, b2, b3, b4]
    wc_r = wc.astype(jnp.bfloat16).astype(jnp.float32)
    ref_logits, ref_hg = [], []
    for gi in range(G):
        a = a_list[gi].astype(jnp.bfloat16).astype(jnp.float32)
        h = x_list[gi]
        for w, b in zip(ws_r, bs):
            h = jnp.maximum((a @ h) @ w + b, 0.0)
        hg_r = h.mean(axis=0, keepdims=True)
        ref_hg.append(hg_r)
        ref_logits.append(hg_r @ wc_r + bc)
    ref_logits = jnp.concatenate(ref_logits, axis=0)
    ref_hg = jnp.concatenate(ref_hg, axis=0)

    assert logits.shape == (G, n_classes)
    assert hg.shape == (G, hidden)
    assert jnp.allclose(hg, ref_hg, rtol=5e-2, atol=5e-2)
    assert jnp.allclose(logits, ref_logits, rtol=5e-2, atol=5e-2)
    print("KERNEL_OK")
</pallas_src>

<mosaic_0001>
module attributes {stable_mosaic.version = 11 : i64} {
  func.func @gcn_classifier_kernel(%arg0: i32, %arg1: memref<4xi32, #tpu.memory_space<smem>>, %arg2: memref<1x128x128xbf16, #tpu.memory_space<vmem>>, %arg3: memref<1x128x128xf32, #tpu.memory_space<vmem>>, %arg4: memref<128x128xbf16, #tpu.memory_space<vmem>>, %arg5: memref<1x128xf32, #tpu.memory_space<vmem>>, %arg6: memref<128x128xbf16, #tpu.memory_space<vmem>>, %arg7: memref<1x128xf32, #tpu.memory_space<vmem>>, %arg8: memref<128x128xbf16, #tpu.memory_space<vmem>>, %arg9: memref<1x128xf32, #tpu.memory_space<vmem>>, %arg10: memref<128x128xbf16, #tpu.memory_space<vmem>>, %arg11: memref<1x128xf32, #tpu.memory_space<vmem>>, %arg12: memref<128x128xbf16, #tpu.memory_space<vmem>>, %arg13: memref<1x128xf32, #tpu.memory_space<vmem>>, %arg14: memref<1x1x128xf32, #tpu.memory_space<vmem>>, %arg15: memref<1x1x128xf32, #tpu.memory_space<vmem>>) attributes {dimension_semantics = [#tpu.dimension_semantics<parallel>], iteration_bounds = array<i64: 4>, scalar_prefetch = 1 : i64, scratch_operands = 0 : i64, tpu.core_type = #tpu.core_type<tc>, window_params = [{transform_indices = @transform_0, window_bounds = array<i64: 1, 128, 128>}, {transform_indices = @transform_1, window_bounds = array<i64: 1, 128, 128>}, {pipeline_mode = #tpu.pipeline_mode<synchronous>, transform_indices = @transform_2, window_bounds = array<i64: 128, 128>}, {pipeline_mode = #tpu.pipeline_mode<synchronous>, transform_indices = @transform_3, window_bounds = array<i64: 1, 128>}, {pipeline_mode = #tpu.pipeline_mode<synchronous>, transform_indices = @transform_4, window_bounds = array<i64: 128, 128>}, {pipeline_mode = #tpu.pipeline_mode<synchronous>, transform_indices = @transform_5, window_bounds = array<i64: 1, 128>}, {pipeline_mode = #tpu.pipeline_mode<synchronous>, transform_indices = @transform_6, window_bounds = array<i64: 128, 128>}, {pipeline_mode = #tpu.pipeline_mode<synchronous>, transform_indices = @transform_7, window_bounds = array<i64: 1, 128>}, {pipeline_mode = #tpu.pipeline_mode<synchronous>, transform_indices = @transform_8, window_bounds = array<i64: 128, 128>}, {pipeline_mode = #tpu.pipeline_mode<synchronous>, transform_indices = @transform_9, window_bounds = array<i64: 1, 128>}, {pipeline_mode = #tpu.pipeline_mode<synchronous>, transform_indices = @transform_10, window_bounds = array<i64: 128, 128>}, {pipeline_mode = #tpu.pipeline_mode<synchronous>, transform_indices = @transform_11, window_bounds = array<i64: 1, 128>}, {transform_indices = @transform_12, window_bounds = array<i64: 1, 1, 128>}, {transform_indices = @transform_13, window_bounds = array<i64: 1, 1, 128>}]} {
    %c0 = arith.constant 0 : index
    %c0_0 = arith.constant 0 : index
    %c0_1 = arith.constant 0 : index
    %0 = vector.load %arg2[%c0, %c0_0, %c0_1] : memref<1x128x128xbf16, #tpu.memory_space<vmem>>, vector<1x128x128xbf16>
    %1 = vector.shape_cast %0 : vector<1x128x128xbf16> to vector<128x128xbf16>
    %c0_2 = arith.constant 0 : index
    %c0_3 = arith.constant 0 : index
    %c0_4 = arith.constant 0 : index
    %2 = vector.load %arg3[%c0_2, %c0_3, %c0_4] : memref<1x128x128xf32, #tpu.memory_space<vmem>>, vector<1x128x128xf32>
    %3 = vector.shape_cast %2 : vector<1x128x128xf32> to vector<128x128xf32>
    %4 = arith.truncf %3 : vector<128x128xf32> to vector<128x128xbf16>
    %cst = arith.constant dense<0.000000e+00> : vector<128x128xf32>
    %5 = tpu.matmul %1, %4, %cst {dimension_numbers = #tpu.dot_dimension_numbers<[1], [0], [0], [1], [0, 0, 1, 1], [], []>} : vector<128x128xbf16>, vector<128x128xbf16>, vector<128x128xf32> -> vector<128x128xf32>
    %6 = arith.truncf %5 : vector<128x128xf32> to vector<128x128xbf16>
    %c0_5 = arith.constant 0 : index
    %c0_6 = arith.constant 0 : index
    %7 = vector.load %arg4[%c0_5, %c0_6] : memref<128x128xbf16, #tpu.memory_space<vmem>>, vector<128x128xbf16>
    %cst_7 = arith.constant dense<0.000000e+00> : vector<128x128xf32>
    %8 = tpu.matmul %6, %7, %cst_7 {dimension_numbers = #tpu.dot_dimension_numbers<[1], [0], [0], [1], [0, 0, 1, 1], [], []>} : vector<128x128xbf16>, vector<128x128xbf16>, vector<128x128xf32> -> vector<128x128xf32>
    %c0_8 = arith.constant 0 : index
    %c0_9 = arith.constant 0 : index
    %9 = vector.load %arg5[%c0_8, %c0_9] : memref<1x128xf32, #tpu.memory_space<vmem>>, vector<1x128xf32>
    %10 = vector.broadcast %9 : vector<1x128xf32> to vector<128x128xf32>
    %11 = arith.addf %8, %10 : vector<128x128xf32>
    %cst_10 = arith.constant 0.000000e+00 : f32
    %12 = vector.broadcast %cst_10 : f32 to vector<128x128xf32>
    %13 = arith.maximumf %11, %12 : vector<128x128xf32>
    %14 = arith.truncf %13 : vector<128x128xf32> to vector<128x128xbf16>
    %cst_11 = arith.constant dense<0.000000e+00> : vector<128x128xf32>
    %15 = tpu.matmul %1, %14, %cst_11 {dimension_numbers = #tpu.dot_dimension_numbers<[1], [0], [0], [1], [0, 0, 1, 1], [], []>} : vector<128x128xbf16>, vector<128x128xbf16>, vector<128x128xf32> -> vector<128x128xf32>
    %16 = arith.truncf %15 : vector<128x128xf32> to vector<128x128xbf16>
    %c0_12 = arith.constant 0 : index
    %c0_13 = arith.constant 0 : index
    %17 = vector.load %arg6[%c0_12, %c0_13] : memref<128x128xbf16, #tpu.memory_space<vmem>>, vector<128x128xbf16>
    %cst_14 = arith.constant dense<0.000000e+00> : vector<128x128xf32>
    %18 = tpu.matmul %16, %17, %cst_14 {dimension_numbers = #tpu.dot_dimension_numbers<[1], [0], [0], [1], [0, 0, 1, 1], [], []>} : vector<128x128xbf16>, vector<128x128xbf16>, vector<128x128xf32> -> vector<128x128xf32>
    %c0_15 = arith.constant 0 : index
    %c0_16 = arith.constant 0 : index
    %19 = vector.load %arg7[%c0_15, %c0_16] : memref<1x128xf32, #tpu.memory_space<vmem>>, vector<1x128xf32>
    %20 = vector.broadcast %19 : vector<1x128xf32> to vector<128x128xf32>
    %21 = arith.addf %18, %20 : vector<128x128xf32>
    %cst_17 = arith.constant 0.000000e+00 : f32
    %22 = vector.broadcast %cst_17 : f32 to vector<128x128xf32>
    %23 = arith.maximumf %21, %22 : vector<128x128xf32>
    %24 = arith.truncf %23 : vector<128x128xf32> to vector<128x128xbf16>
    %cst_18 = arith.constant dense<0.000000e+00> : vector<128x128xf32>
    %25 = tpu.matmul %1, %24, %cst_18 {dimension_numbers = #tpu.dot_dimension_numbers<[1], [0], [0], [1], [0, 0, 1, 1], [], []>} : vector<128x128xbf16>, vector<128x128xbf16>, vector<128x128xf32> -> vector<128x128xf32>
    %26 = arith.truncf %25 : vector<128x128xf32> to vector<128x128xbf16>
    %c0_19 = arith.constant 0 : index
    %c0_20 = arith.constant 0 : index
    %27 = vector.load %arg8[%c0_19, %c0_20] : memref<128x128xbf16, #tpu.memory_space<vmem>>, vector<128x128xbf16>
    %cst_21 = arith.constant dense<0.000000e+00> : vector<128x128xf32>
    %28 = tpu.matmul %26, %27, %cst_21 {dimension_numbers = #tpu.dot_dimension_numbers<[1], [0], [0], [1], [0, 0, 1, 1], [], []>} : vector<128x128xbf16>, vector<128x128xbf16>, vector<128x128xf32> -> vector<128x128xf32>
    %c0_22 = arith.constant 0 : index
    %c0_23 = arith.constant 0 : index
    %29 = vector.load %arg9[%c0_22, %c0_23] : memref<1x128xf32, #tpu.memory_space<vmem>>, vector<1x128xf32>
    %30 = vector.broadcast %29 : vector<1x128xf32> to vector<128x128xf32>
    %31 = arith.addf %28, %30 : vector<128x128xf32>
    %cst_24 = arith.constant 0.000000e+00 : f32
    %32 = vector.broadcast %cst_24 : f32 to vector<128x128xf32>
    %33 = arith.maximumf %31, %32 : vector<128x128xf32>
    %34 = arith.truncf %33 : vector<128x128xf32> to vector<128x128xbf16>
    %cst_25 = arith.constant dense<0.000000e+00> : vector<128x128xf32>
    %35 = tpu.matmul %1, %34, %cst_25 {dimension_numbers = #tpu.dot_dimension_numbers<[1], [0], [0], [1], [0, 0, 1, 1], [], []>} : vector<128x128xbf16>, vector<128x128xbf16>, vector<128x128xf32> -> vector<128x128xf32>
    %36 = arith.truncf %35 : vector<128x128xf32> to vector<128x128xbf16>
    %c0_26 = arith.constant 0 : index
    %c0_27 = arith.constant 0 : index
    %37 = vector.load %arg10[%c0_26, %c0_27] : memref<128x128xbf16, #tpu.memory_space<vmem>>, vector<128x128xbf16>
    %cst_28 = arith.constant dense<0.000000e+00> : vector<128x128xf32>
    %38 = tpu.matmul %36, %37, %cst_28 {dimension_numbers = #tpu.dot_dimension_numbers<[1], [0], [0], [1], [0, 0, 1, 1], [], []>} : vector<128x128xbf16>, vector<128x128xbf16>, vector<128x128xf32> -> vector<128x128xf32>
    %c0_29 = arith.constant 0 : index
    %c0_30 = arith.constant 0 : index
    %39 = vector.load %arg11[%c0_29, %c0_30] : memref<1x128xf32, #tpu.memory_space<vmem>>, vector<1x128xf32>
    %40 = vector.broadcast %39 : vector<1x128xf32> to vector<128x128xf32>
    %41 = arith.addf %38, %40 : vector<128x128xf32>
    %cst_31 = arith.constant 0.000000e+00 : f32
    %42 = vector.broadcast %cst_31 : f32 to vector<128x128xf32>
    %43 = arith.maximumf %41, %42 : vector<128x128xf32>
    %44 = arith.index_cast %arg0 : i32 to index
    %45 = memref.load %arg1[%44] : memref<4xi32, #tpu.memory_space<smem>>
    %46 = tpu.iota {dimensions = array<i32: 0>} : vector<128x128xi32>
    %47 = vector.broadcast %45 : i32 to vector<128x128xi32>
    %48 = arith.cmpi slt, %46, %47 : vector<128x128xi32>
    %cst_32 = arith.constant 0.000000e+00 : f32
    %49 = vector.broadcast %cst_32 : f32 to vector<128x128xf32>
    %50 = arith.select %48, %43, %49 : vector<128x128xi1>, vector<128x128xf32>
    %cst_33 = arith.constant dense<0.000000e+00> : vector<128xf32>
    %51 = vector.multi_reduction <add>, %50, %cst_33 [0] : vector<128x128xf32> to vector<128xf32>
    %52 = vector.shape_cast %51 : vector<128xf32> to vector<1x128xf32>
    %53 = arith.sitofp %45 : i32 to f32
    %54 = vector.broadcast %53 : f32 to vector<1x128xf32>
    %55 = arith.divf %52, %54 : vector<1x128xf32>
    %c0_34 = arith.constant 0 : index
    %c0_35 = arith.constant 0 : index
    %c0_36 = arith.constant 0 : index
    %56 = vector.load %arg15[%c0_34, %c0_35, %c0_36] : memref<1x1x128xf32, #tpu.memory_space<vmem>>, vector<1x1x128xf32>
    %57 = vector.shape_cast %56 : vector<1x1x128xf32> to vector<1x128xf32>
    %58 = vector.shape_cast %55 : vector<1x128xf32> to vector<1x1x128xf32>
    tpu.vector_store %arg15[%c0_34, %c0_35, %c0_36], %58 {strides = array<i32>} : memref<1x1x128xf32, #tpu.memory_space<vmem>>, vector<1x1x128xf32>,
    %59 = arith.truncf %55 : vector<1x128xf32> to vector<1x128xbf16>
    %c0_37 = arith.constant 0 : index
    %c0_38 = arith.constant 0 : index
    %60 = vector.load %arg12[%c0_37, %c0_38] : memref<128x128xbf16, #tpu.memory_space<vmem>>, vector<128x128xbf16>
    %cst_39 = arith.constant dense<0.000000e+00> : vector<1x128xf32>
    %61 = tpu.matmul %59, %60, %cst_39 {dimension_numbers = #tpu.dot_dimension_numbers<[1], [0], [0], [1], [0, 0, 1, 1], [], []>} : vector<1x128xbf16>, vector<128x128xbf16>, vector<1x128xf32> -> vector<1x128xf32>
    %c0_40 = arith.constant 0 : index
    %c0_41 = arith.constant 0 : index
    %62 = vector.load %arg13[%c0_40, %c0_41] : memref<1x128xf32, #tpu.memory_space<vmem>>, vector<1x128xf32>
    %63 = arith.addf %61, %62 : vector<1x128xf32>
    %c0_42 = arith.constant 0 : index
    %c0_43 = arith.constant 0 : index
    %c0_44 = arith.constant 0 : index
    %64 = vector.load %arg14[%c0_42, %c0_43, %c0_44] : memref<1x1x128xf32, #tpu.memory_space<vmem>>, vector<1x1x128xf32>
    %65 = vector.shape_cast %64 : vector<1x1x128xf32> to vector<1x128xf32>
    %66 = vector.shape_cast %63 : vector<1x128xf32> to vector<1x1x128xf32>
    tpu.vector_store %arg14[%c0_42, %c0_43, %c0_44], %66 {strides = array<i32>} : memref<1x1x128xf32, #tpu.memory_space<vmem>>, vector<1x1x128xf32>,
    return
  }
  func.func @transform_0(%arg0: i32, %arg1: memref<4xi32, #tpu.memory_space<smem>>) -> (i32, i32, i32) {
    %c0_i32 = arith.constant 0 : i32
    %c0_i32_0 = arith.constant 0 : i32
    %c0_i32_1 = arith.constant 0 : i32
    return %arg0, %c0_i32, %c0_i32_0 : i32, i32, i32
  }
  func.func @transform_1(%arg0: i32, %arg1: memref<4xi32, #tpu.memory_space<smem>>) -> (i32, i32, i32) {
    %c0_i32 = arith.constant 0 : i32
    %c0_i32_0 = arith.constant 0 : i32
    %c0_i32_1 = arith.constant 0 : i32
    return %arg0, %c0_i32, %c0_i32_0 : i32, i32, i32
  }
  func.func @transform_2(%arg0: i32, %arg1: memref<4xi32, #tpu.memory_space<smem>>) -> (i32, i32) {
    %c0_i32 = arith.constant 0 : i32
    %c0_i32_0 = arith.constant 0 : i32
    %c0_i32_1 = arith.constant 0 : i32
    return %c0_i32, %c0_i32_0 : i32, i32
  }
  func.func @transform_3(%arg0: i32, %arg1: memref<4xi32, #tpu.memory_space<smem>>) -> (i32, i32) {
    %c0_i32 = arith.constant 0 : i32
    %c0_i32_0 = arith.constant 0 : i32
    %c0_i32_1 = arith.constant 0 : i32
    return %c0_i32, %c0_i32_0 : i32, i32
  }
  func.func @transform_4(%arg0: i32, %arg1: memref<4xi32, #tpu.memory_space<smem>>) -> (i32, i32) {
    %c0_i32 = arith.constant 0 : i32
    %c0_i32_0 = arith.constant 0 : i32
    %c0_i32_1 = arith.constant 0 : i32
    return %c0_i32, %c0_i32_0 : i32, i32
  }
  func.func @transform_5(%arg0: i32, %arg1: memref<4xi32, #tpu.memory_space<smem>>) -> (i32, i32) {
    %c0_i32 = arith.constant 0 : i32
    %c0_i32_0 = arith.constant 0 : i32
    %c0_i32_1 = arith.constant 0 : i32
    return %c0_i32, %c0_i32_0 : i32, i32
  }
  func.func @transform_6(%arg0: i32, %arg1: memref<4xi32, #tpu.memory_space<smem>>) -> (i32, i32) {
    %c0_i32 = arith.constant 0 : i32
    %c0_i32_0 = arith.constant 0 : i32
    %c0_i32_1 = arith.constant 0 : i32
    return %c0_i32, %c0_i32_0 : i32, i32
  }
  func.func @transform_7(%arg0: i32, %arg1: memref<4xi32, #tpu.memory_space<smem>>) -> (i32, i32) {
    %c0_i32 = arith.constant 0 : i32
    %c0_i32_0 = arith.constant 0 : i32
    %c0_i32_1 = arith.constant 0 : i32
    return %c0_i32, %c0_i32_0 : i32, i32
  }
  func.func @transform_8(%arg0: i32, %arg1: memref<4xi32, #tpu.memory_space<smem>>) -> (i32, i32) {
    %c0_i32 = arith.constant 0 : i32
    %c0_i32_0 = arith.constant 0 : i32
    %c0_i32_1 = arith.constant 0 : i32
    return %c0_i32, %c0_i32_0 : i32, i32
  }
  func.func @transform_9(%arg0: i32, %arg1: memref<4xi32, #tpu.memory_space<smem>>) -> (i32, i32) {
    %c0_i32 = arith.constant 0 : i32
    %c0_i32_0 = arith.constant 0 : i32
    %c0_i32_1 = arith.constant 0 : i32
    return %c0_i32, %c0_i32_0 : i32, i32
  }
  func.func @transform_10(%arg0: i32, %arg1: memref<4xi32, #tpu.memory_space<smem>>) -> (i32, i32) {
    %c0_i32 = arith.constant 0 : i32
    %c0_i32_0 = arith.constant 0 : i32
    %c0_i32_1 = arith.constant 0 : i32
    return %c0_i32, %c0_i32_0 : i32, i32
  }
  func.func @transform_11(%arg0: i32, %arg1: memref<4xi32, #tpu.memory_space<smem>>) -> (i32, i32) {
    %c0_i32 = arith.constant 0 : i32
    %c0_i32_0 = arith.constant 0 : i32
    %c0_i32_1 = arith.constant 0 : i32
    return %c0_i32, %c0_i32_0 : i32, i32
  }
  func.func @transform_12(%arg0: i32, %arg1: memref<4xi32, #tpu.memory_space<smem>>) -> (i32, i32, i32) {
    %c0_i32 = arith.constant 0 : i32
    %c0_i32_0 = arith.constant 0 : i32
    %c0_i32_1 = arith.constant 0 : i32
    return %arg0, %c0_i32, %c0_i32_0 : i32, i32, i32
  }
  func.func @transform_13(%arg0: i32, %arg1: memref<4xi32, #tpu.memory_space<smem>>) -> (i32, i32, i32) {
    %c0_i32 = arith.constant 0 : i32
    %c0_i32_0 = arith.constant 0 : i32
    %c0_i32_1 = arith.constant 0 : i32
    return %arg0, %c0_i32, %c0_i32_0 : i32, i32, i32
  }
}

</mosaic_0001>

<llo_original>
// kernel: tpu_custom_call.1
$region0: #{tpu_custom_call.1}
  #allocation0 [shape = 'u32[]', space=smem, size = 0x4, offset = 0x4, fixed_abs, tag = 'smem constant byte address 0x4 - core index']
  #allocation1 [shape = 'u32[144,128]{1,0:T(1,128)}', space=vmem, size = 0x12000, scoped, tag = 'internal scratch']
  #allocation2 [shape = 's32[1]{0}', space=sflag, size = 0x4, scoped, tag = 'scoped memory for tpu_custom_call.1']
  #allocation3 [shape = 'u8[512]{0}', space=smem, size = 0x200, scoped, tag = 'prefetched SMEM operand 0']
  %s0 = inlined_call_operand.hbm [shape: s32[4], index: 0, kind: input, shape index: {}]
  %s1 = inlined_call_operand.hbm [shape: bf16[4,128,128], index: 1, kind: input, shape index: {}]
  %s2 = inlined_call_operand.hbm [shape: f32[4,128,128], index: 2, kind: input, shape index: {}]
  %s3 = inlined_call_operand.hbm [shape: bf16[128,128], index: 3, kind: input, shape index: {}]
  %s4 = inlined_call_operand.vmem [shape: f32[1,128], index: 4, kind: input, shape index: {}]
  %s5 = inlined_call_operand.hbm [shape: bf16[128,128], index: 5, kind: input, shape index: {}]
  %s6 = inlined_call_operand.vmem [shape: f32[1,128], index: 6, kind: input, shape index: {}]
  %s7 = inlined_call_operand.hbm [shape: bf16[128,128], index: 7, kind: input, shape index: {}]
  %s8 = inlined_call_operand.vmem [shape: f32[1,128], index: 8, kind: input, shape index: {}]
  %s9 = inlined_call_operand.hbm [shape: bf16[128,128], index: 9, kind: input, shape index: {}]
  %s10 = inlined_call_operand.vmem [shape: f32[1,128], index: 10, kind: input, shape index: {}]
  %s11 = inlined_call_operand.hbm [shape: bf16[128,128], index: 11, kind: input, shape index: {}]
  %s12 = inlined_call_operand.vmem [shape: f32[1,128], index: 12, kind: input, shape index: {}]
  %s13 = inlined_call_operand.hbm [shape: f32[4,1,128], index: 13, kind: output, shape index: {0}]
  %s14 = inlined_call_operand.hbm [shape: f32[4,1,128], index: 14, kind: output, shape index: {1}]
  %15 = xla_tuple %s13, %s14
  %s16 = sld [smem:[#allocation0]]
  $region117: #{tpu_custom_call.1} parent=0
    _
  %s18 = ssub.s32 1, %s16
  %s19 = scalar_select 0, %s18, %s16
  %21 = dma.hbm_to_smem %s0, 16, [#allocation3], [#allocation2]
  %22 = dma.done [#allocation2], 16
  %23 = sfence
  $region1: #{tpu_custom_call.1} parent=0
    #allocation4 [shape = 'u8[65536]{0}', space=vmem, size = 0x10000, scoped, tag = 'input window, operand 1']
    #allocation5 [shape = 's32[2]{0}', space=sflag, size = 0x8, scoped, tag = 'scoped memory for tpu_custom_call.1']
    #allocation6 [shape = 's32[2]{0}', space=sflag, size = 0x8, scoped, tag = 'scoped memory for tpu_custom_call.1']
    #allocation7 [shape = 'u8[131072]{0}', space=vmem, size = 0x20000, scoped, tag = 'input window, operand 2']
    #allocation8 [shape = 's32[2]{0}', space=sflag, size = 0x8, scoped, tag = 'scoped memory for tpu_custom_call.1']
    #allocation9 [shape = 'u8[32768]{0}', space=vmem, size = 0x8000, scoped, tag = 'input window, operand 3, single buffered']
    #allocation10 [shape = 'u8[32768]{0}', space=vmem, size = 0x8000, scoped, tag = 'input window, operand 5, single buffered']
    #allocation11 [shape = 's32[1]{0}', space=sflag, size = 0x4, scoped, tag = 'scoped memory for tpu_custom_call.1']
    #allocation12 [shape = 'u8[32768]{0}', space=vmem, size = 0x8000, scoped, tag = 'input window, operand 7, single buffered']
    #allocation13 [shape = 'u8[32768]{0}', space=vmem, size = 0x8000, scoped, tag = 'input window, operand 9, single buffered']
    #allocation14 [shape = 's32[1]{0}', space=sflag, size = 0x4, scoped, tag = 'scoped memory for tpu_custom_call.1']
    #allocation15 [shape = 'u8[32768]{0}', space=vmem, size = 0x8000, scoped, tag = 'input window, operand 11, single buffered']
    #allocation16 [shape = 'u8[1024]{0}', space=vmem, size = 0x400, scoped, tag = 'output window, operand 0']
    #allocation17 [shape = 'u8[1024]{0}', space=vmem, size = 0x400, scoped, tag = 'output window, operand 1']
    #allocation18 [shape = 's32[2]{0}', space=sflag, size = 0x8, scoped, tag = 'scoped memory for tpu_custom_call.1']
    %24 = vsyncpa [#allocation5], 0
    %s25 = scalar_lea.sflag [#allocation5], 1
    %26 = vsyncpa %s25, 0
    %27 = vsyncpa [#allocation8], 0
    %s28 = scalar_lea.sflag [#allocation8], 1
    %29 = vsyncpa %s28, 0
    %30 = vsyncpa [#allocation11], 0
    %31 = vsyncpa [#allocation14], 0
    %32 = vsyncpa [#allocation6], 0
    %s33 = scalar_lea.sflag [#allocation6], 1
    %34 = vsyncpa %s33, 0
    %35 = vsyncpa [#allocation18], 0
    %s36 = scalar_lea.sflag [#allocation18], 1
    %37 = vsyncpa %s36, 0
    loop: start=0, step=1, limit=6
    $region2: #{tpu_custom_call.1} parent=1 // loop_pre_header
      _
    $region3: #{tpu_custom_call.1} parent=1 // loop_header
      %s39 = sphi 0, %s43
      %p40 = scmp.ge.s32.totalorder %s39, 6
      %s49 = sphi 0, %s51
      %s52 = sphi 0, %s49
      %s53 = sphi 0, %s52
      %s69 = sphi 0, %s53
      %s75 = sphi 0, %s77
      %s78 = sphi 0, %s75
      %s79 = sphi 0, %s78
      %s95 = sphi 0, %s79
      %s99 = sphi 0, %s99
      %s101 = sphi 0, %s99
      %s102 = sphi 0, %s101
      %s116 = sphi 0, %s102
      %s120 = sphi 0, %s120
      %s122 = sphi 0, %s120
      %s123 = sphi 0, %s122
      %s137 = sphi 0, %s123
      %s141 = sphi 0, %s141
      %s143 = sphi 0, %s141
      %s144 = sphi 0, %s143
      %s158 = sphi 0, %s144
      %s162 = sphi 0, %s162
      %s164 = sphi 0, %s162
      %s165 = sphi 0, %s164
      %s179 = sphi 0, %s165
      %s183 = sphi 0, %s183
      %s185 = sphi 0, %s183
      %s186 = sphi 0, %s185
      %s200 = sphi 0, %s186
      %s204 = sphi 0, %s204
      %s206 = sphi 0, %s204
      %s207 = sphi 0, %s206
      %s221 = sphi 0, %s207
      %s225 = sphi 0, %s225
      %s227 = sphi 0, %s225
      %s228 = sphi 0, %s227
      %s242 = sphi 0, %s228
      %s246 = sphi 0, %s246
      %s248 = sphi 0, %s246
      %s249 = sphi 0, %s248
      %s263 = sphi 0, %s249
      %s267 = sphi 0, %s267
      %s269 = sphi 0, %s267
      %s270 = sphi 0, %s269
      %s284 = sphi 0, %s270
      %s288 = sphi 0, %s288
      %s290 = sphi 0, %s288
      %s291 = sphi 0, %s290
      %s305 = sphi 0, %s291
      %s311 = sphi 0, %s313
      %s314 = sphi 0, %s311
      %s315 = sphi 0, %s314
      %s331 = sphi 0, %s315
      %s337 = sphi 0, %s339
      %s340 = sphi 0, %s337
      %s341 = sphi 0, %s340
      %s357 = sphi 0, %s341
    $region4: #{tpu_custom_call.1} parent=1 // loop_header_branch
      %42 = sbr.rel (%p40) target = $region8
    $region5: #{tpu_custom_call.1} parent=1 // loop_body
      %s44 = ssub.s32 %s39, 1
      %s45 = ssub.s32 %s39, 2
      %s46 = sadd.s32 %s39, 1
      %s47 = ssub.s32 %s39, %s46
      %p48 = scmp.eq.s32.totalorder %s47, 0
      %s50 = sadd.s32 %s49, 1
      %s51 = scalar_select %p48, %s49, %s50
      %p54 = pneg %p48
      %p55 = scmp.eq.s32.totalorder %s39, 3
      %p56 = por %p54, %p55
      %p57 = scmp.ne.s32.totalorder %s49, %s52
      %p58 = scmp.eq.s32.totalorder %s39, 0
      %p59 = por %p57, %p58
      %p60 = scmp.ne.s32.totalorder %s49, %s52
      %p61 = scmp.eq.s32.totalorder %s44, 3
      %p62 = por %p60, %p61
      %p63 = scmp.ne.s32.totalorder %s52, %s53
      %p64 = scmp.eq.s32.totalorder %s44, 0
      %p65 = por %p63, %p64
      %p66 = scmp.ne.s32.totalorder %s52, %s53
      %p67 = scmp.eq.s32.totalorder %s45, 3
      %p68 = por %p66, %p67
      %p70 = scmp.ne.s32.totalorder %s53, %s69
      %p71 = scmp.eq.s32.totalorder %s45, 0
      %p72 = por %p70, %p71
      %s73 = ssub.s32 %s39, %s46
      %p74 = scmp.eq.s32.totalorder %s73, 0
      %s76 = sadd.s32 %s75, 1
      %s77 = scalar_select %p74, %s75, %s76
      %p80 = pneg %p74
      %p81 = scmp.eq.s32.totalorder %s39, 3
      %p82 = por %p80, %p81
      %p83 = scmp.ne.s32.totalorder %s75, %s78
      %p84 = scmp.eq.s32.totalorder %s39, 0
      %p85 = por %p83, %p84
      %p86 = scmp.ne.s32.totalorder %s75, %s78
      %p87 = scmp.eq.s32.totalorder %s44, 3
      %p88 = por %p86, %p87
      %p89 = scmp.ne.s32.totalorder %s78, %s79
      %p90 = scmp.eq.s32.totalorder %s44, 0
      %p91 = por %p89, %p90
      %p92 = scmp.ne.s32.totalorder %s78, %s79
      %p93 = scmp.eq.s32.totalorder %s45, 3
      %p94 = por %p92, %p93
      %p96 = scmp.ne.s32.totalorder %s79, %s95
      %p97 = scmp.eq.s32.totalorder %s45, 0
      %p98 = por %p96, %p97
      %s100 = sadd.s32 %s99, 1
      %p103 = scmp.eq.s32.totalorder %s39, 3
      %p104 = scmp.ne.s32.totalorder %s99, %s101
      %p105 = scmp.eq.s32.totalorder %s39, 0
      %p106 = por %p104, %p105
      %p107 = scmp.ne.s32.totalorder %s99, %s101
      %p108 = scmp.eq.s32.totalorder %s44, 3
      %p109 = por %p107, %p108
      %p110 = scmp.ne.s32.totalorder %s101, %s102
      %p111 = scmp.eq.s32.totalorder %s44, 0
      %p112 = por %p110, %p111
      %p113 = scmp.ne.s32.totalorder %s101, %s102
      %p114 = scmp.eq.s32.totalorder %s45, 3
      %p115 = por %p113, %p114
      %p117 = scmp.ne.s32.totalorder %s102, %s116
      %p118 = scmp.eq.s32.totalorder %s45, 0
      %p119 = por %p117, %p118
      %s121 = sadd.s32 %s120, 1
      %p124 = scmp.eq.s32.totalorder %s39, 3
      %p125 = scmp.ne.s32.totalorder %s120, %s122
      %p126 = scmp.eq.s32.totalorder %s39, 0
      %p127 = por %p125, %p126
      %p128 = scmp.ne.s32.totalorder %s120, %s122
      %p129 = scmp.eq.s32.totalorder %s44, 3
      %p130 = por %p128, %p129
      %p131 = scmp.ne.s32.totalorder %s122, %s123
      %p132 = scmp.eq.s32.totalorder %s44, 0
      %p133 = por %p131, %p132
      %p134 = scmp.ne.s32.totalorder %s122, %s123
      %p135 = scmp.eq.s32.totalorder %s45, 3
      %p136 = por %p134, %p135
      %p138 = scmp.ne.s32.totalorder %s123, %s137
      %p139 = scmp.eq.s32.totalorder %s45, 0
      %p140 = por %p138, %p139
      %s142 = sadd.s32 %s141, 1
      %p145 = scmp.eq.s32.totalorder %s39, 3
      %p146 = scmp.ne.s32.totalorder %s141, %s143
      %p147 = scmp.eq.s32.totalorder %s39, 0
      %p148 = por %p146, %p147
      %p149 = scmp.ne.s32.totalorder %s141, %s143
      %p150 = scmp.eq.s32.totalorder %s44, 3
      %p151 = por %p149, %p150
      %p152 = scmp.ne.s32.totalorder %s143, %s144
      %p153 = scmp.eq.s32.totalorder %s44, 0
      %p154 = por %p152, %p153
      %p155 = scmp.ne.s32.totalorder %s143, %s144
      %p156 = scmp.eq.s32.totalorder %s45, 3
      %p157 = por %p155, %p156
      %p159 = scmp.ne.s32.totalorder %s144, %s158
      %p160 = scmp.eq.s32.totalorder %s45, 0
      %p161 = por %p159, %p160
      %s163 = sadd.s32 %s162, 1
      %p166 = scmp.eq.s32.totalorder %s39, 3
      %p167 = scmp.ne.s32.totalorder %s162, %s164
      %p168 = scmp.eq.s32.totalorder %s39, 0
      %p169 = por %p167, %p168
      %p170 = scmp.ne.s32.totalorder %s162, %s164
      %p171 = scmp.eq.s32.totalorder %s44, 3
      %p172 = por %p170, %p171
      %p173 = scmp.ne.s32.totalorder %s164, %s165
      %p174 = scmp.eq.s32.totalorder %s44, 0
      %p175 = por %p173, %p174
      %p176 = scmp.ne.s32.totalorder %s164, %s165
      %p177 = scmp.eq.s32.totalorder %s45, 3
      %p178 = por %p176, %p177
      %p180 = scmp.ne.s32.totalorder %s165, %s179
      %p181 = scmp.eq.s32.totalorder %s45, 0
      %p182 = por %p180, %p181
      %s184 = sadd.s32 %s183, 1
      %p187 = scmp.eq.s32.totalorder %s39, 3
      %p188 = scmp.ne.s32.totalorder %s183, %s185
      %p189 = scmp.eq.s32.totalorder %s39, 0
      %p190 = por %p188, %p189
      %p191 = scmp.ne.s32.totalorder %s183, %s185
      %p192 = scmp.eq.s32.totalorder %s44, 3
      %p193 = por %p191, %p192
      %p194 = scmp.ne.s32.totalorder %s185, %s186
      %p195 = scmp.eq.s32.totalorder %s44, 0
      %p196 = por %p194, %p195
      %p197 = scmp.ne.s32.totalorder %s185, %s186
      %p198 = scmp.eq.s32.totalorder %s45, 3
      %p199 = por %p197, %p198
      %p201 = scmp.ne.s32.totalorder %s186, %s200
      %p202 = scmp.eq.s32.totalorder %s45, 0
      %p203 = por %p201, %p202
      %s205 = sadd.s32 %s204, 1
      %p208 = scmp.eq.s32.totalorder %s39, 3
      %p209 = scmp.ne.s32.totalorder %s204, %s206
      %p210 = scmp.eq.s32.totalorder %s39, 0
      %p211 = por %p209, %p210
      %p212 = scmp.ne.s32.totalorder %s204, %s206
      %p213 = scmp.eq.s32.totalorder %s44, 3
      %p214 = por %p212, %p213
      %p215 = scmp.ne.s32.totalorder %s206, %s207
      %p216 = scmp.eq.s32.totalorder %s44, 0
      %p217 = por %p215, %p216
      %p218 = scmp.ne.s32.totalorder %s206, %s207
      %p219 = scmp.eq.s32.totalorder %s45, 3
      %p220 = por %p218, %p219
      %p222 = scmp.ne.s32.totalorder %s207, %s221
      %p223 = scmp.eq.s32.totalorder %s45, 0
      %p224 = por %p222, %p223
      %s226 = sadd.s32 %s225, 1
      %p229 = scmp.eq.s32.totalorder %s39, 3
      %p230 = scmp.ne.s32.totalorder %s225, %s227
      %p231 = scmp.eq.s32.totalorder %s39, 0
      %p232 = por %p230, %p231
      %p233 = scmp.ne.s32.totalorder %s225, %s227
      %p234 = scmp.eq.s32.totalorder %s44, 3
      %p235 = por %p233, %p234
      %p236 = scmp.ne.s32.totalorder %s227, %s228
      %p237 = scmp.eq.s32.totalorder %s44, 0
      %p238 = por %p236, %p237
      %p239 = scmp.ne.s32.totalorder %s227, %s228
      %p240 = scmp.eq.s32.totalorder %s45, 3
      %p241 = por %p239, %p240
      %p243 = scmp.ne.s32.totalorder %s228, %s242
      %p244 = scmp.eq.s32.totalorder %s45, 0
      %p245 = por %p243, %p244
      %s247 = sadd.s32 %s246, 1
      %p250 = scmp.eq.s32.totalorder %s39, 3
      %p251 = scmp.ne.s32.totalorder %s246, %s248
      %p252 = scmp.eq.s32.totalorder %s39, 0
      %p253 = por %p251, %p252
      %p254 = scmp.ne.s32.totalorder %s246, %s248
      %p255 = scmp.eq.s32.totalorder %s44, 3
      %p256 = por %p254, %p255
      %p257 = scmp.ne.s32.totalorder %s248, %s249
      %p258 = scmp.eq.s32.totalorder %s44, 0
      %p259 = por %p257, %p258
      %p260 = scmp.ne.s32.totalorder %s248, %s249
      %p261 = scmp.eq.s32.totalorder %s45, 3
      %p262 = por %p260, %p261
      %p264 = scmp.ne.s32.totalorder %s249, %s263
      %p265 = scmp.eq.s32.totalorder %s45, 0
      %p266 = por %p264, %p265
      %s268 = sadd.s32 %s267, 1
      %p271 = scmp.eq.s32.totalorder %s39, 3
      %p272 = scmp.ne.s32.totalorder %s267, %s269
      %p273 = scmp.eq.s32.totalorder %s39, 0
      %p274 = por %p272, %p273
      %p275 = scmp.ne.s32.totalorder %s267, %s269
      %p276 = scmp.eq.s32.totalorder %s44, 3
      %p277 = por %p275, %p276
      %p278 = scmp.ne.s32.totalorder %s269, %s270
      %p279 = scmp.eq.s32.totalorder %s44, 0
      %p280 = por %p278, %p279
      %p281 = scmp.ne.s32.totalorder %s269, %s270
      %p282 = scmp.eq.s32.totalorder %s45, 3
      %p283 = por %p281, %p282
      %p285 = scmp.ne.s32.totalorder %s270, %s284
      %p286 = scmp.eq.s32.totalorder %s45, 0
      %p287 = por %p285, %p286
      %s289 = sadd.s32 %s288, 1
      %p292 = scmp.eq.s32.totalorder %s39, 3
      %p293 = scmp.ne.s32.totalorder %s288, %s290
      %p294 = scmp.eq.s32.totalorder %s39, 0
      %p295 = por %p293, %p294
      %p296 = scmp.ne.s32.totalorder %s288, %s290
      %p297 = scmp.eq.s32.totalorder %s44, 3
      %p298 = por %p296, %p297
      %p299 = scmp.ne.s32.totalorder %s290, %s291
      %p300 = scmp.eq.s32.totalorder %s44, 0
      %p301 = por %p299, %p300
      %p302 = scmp.ne.s32.totalorder %s290, %s291
      %p303 = scmp.eq.s32.totalorder %s45, 3
      %p304 = por %p302, %p303
      %p306 = scmp.ne.s32.totalorder %s291, %s305
      %p307 = scmp.eq.s32.totalorder %s45, 0
      %p308 = por %p306, %p307
      %s309 = ssub.s32 %s39, %s46
      %p310 = scmp.eq.s32.totalorder %s309, 0
      %s312 = sadd.s32 %s311, 1
      %s313 = scalar_select %p310, %s311, %s312
      %p316 = pneg %p310
      %p317 = scmp.eq.s32.totalorder %s39, 3
      %p318 = por %p316, %p317
      %p319 = scmp.ne.s32.totalorder %s311, %s314
      %p320 = scmp.eq.s32.totalorder %s39, 0
      %p321 = por %p319, %p320
      %p322 = scmp.ne.s32.totalorder %s311, %s314
      %p323 = scmp.eq.s32.totalorder %s44, 3
      %p324 = por %p322, %p323
      %p325 = scmp.ne.s32.totalorder %s314, %s315
      %p326 = scmp.eq.s32.totalorder %s44, 0
      %p327 = por %p325, %p326
      %p328 = scmp.ne.s32.totalorder %s314, %s315
      %p329 = scmp.eq.s32.totalorder %s45, 3
      %p330 = por %p328, %p329
      %p332 = scmp.ne.s32.totalorder %s315, %s331
      %p333 = scmp.eq.s32.totalorder %s45, 0
      %p334 = por %p332, %p333
      %s335 = ssub.s32 %s39, %s46
      %p336 = scmp.eq.s32.totalorder %s335, 0
      %s338 = sadd.s32 %s337, 1
      %s339 = scalar_select %p336, %s337, %s338
      %p342 = pneg %p336
      %p343 = scmp.eq.s32.totalorder %s39, 3
      %p344 = por %p342, %p343
      %p345 = scmp.ne.s32.totalorder %s337, %s340
      %p346 = scmp.eq.s32.totalorder %s39, 0
      %p347 = por %p345, %p346
      %p348 = scmp.ne.s32.totalorder %s337, %s340
      %p349 = scmp.eq.s32.totalorder %s44, 3
      %p350 = por %p348, %p349
      %p351 = scmp.ne.s32.totalorder %s340, %s341
      %p352 = scmp.eq.s32.totalorder %s44, 0
      %p353 = por %p351, %p352
      %p354 = scmp.ne.s32.totalorder %s340, %s341
      %p355 = scmp.eq.s32.totalorder %s45, 3
      %p356 = por %p354, %p355
      %p358 = scmp.ne.s32.totalorder %s341, %s357
      %p359 = scmp.eq.s32.totalorder %s45, 0
      %p360 = por %p358, %p359
      %p361 = scmp.le.s32.totalorder 1, %s39
      %p362 = scmp.lt.s32.totalorder %s39, 5
      %p363 = pnand %p361, %p362
      %p364 = pneg %p363
      // Predicated region
      $region9: #{tpu_custom_call.1} parent=5 // pred_check
        _
      $region10: #{tpu_custom_call.1} parent=5 // pred_check_branch
        %366 = sbr.rel (%p363) target = $region12
      $region11: #{tpu_custom_call.1} parent=5 // pred_region
        %s367 = ssub.s32 %s39, 1
        // Predicated region
        $region13: #{tpu_custom_call.1} parent=11 // pred_check
          %p368 = pneg %p112
        $region14: #{tpu_custom_call.1} parent=11 // pred_check_branch
          %370 = sbr.rel (%p368) target = $region16
        $region15: #{tpu_custom_call.1} parent=11 // pred_region
          %s372 = ssub.s32 1024, 1024
          %373 = vsyncadd [#allocation8], %s372
          %s374 = sshll.u32 [#allocation9], 4
          %s375 = int_to_ptr.vmem [resolvable:$true] %s374
          %380 = dma.hbm_to_vmem [thread:$0]  %s3, 1024, %s375, [#allocation8], 64, 64, 4
        $region16: #{tpu_custom_call.1} parent=11 // pred_fallthru
          _
        // Predicated region
        $region17: #{tpu_custom_call.1} parent=11 // pred_check
          %p381 = pneg %p133
        $region18: #{tpu_custom_call.1} parent=11 // pred_check_branch
          %383 = sbr.rel (%p381) target = $region20
        $region19: #{tpu_custom_call.1} parent=11 // pred_region
          _
        $region20: #{tpu_custom_call.1} parent=11 // pred_fallthru
          _
        // Predicated region
        $region21: #{tpu_custom_call.1} parent=11 // pred_check
          %p384 = pneg %p154
        $region22: #{tpu_custom_call.1} parent=11 // pred_check_branch
          %386 = sbr.rel (%p384) target = $region24
        $region23: #{tpu_custom_call.1} parent=11 // pred_region
          %s388 = ssub.s32 1024, 1024
          %389 = vsyncadd [#allocation11], %s388
          %s390 = sshll.u32 [#allocation10], 4
          %s391 = int_to_ptr.vmem [resolvable:$true] %s390
          %396 = dma.hbm_to_vmem [thread:$0]  %s5, 1024, %s391, [#allocation11], 64, 64, 4
        $region24: #{tpu_custom_call.1} parent=11 // pred_fallthru
          _
        // Predicated region
        $region25: #{tpu_custom_call.1} parent=11 // pred_check
          %p397 = pneg %p175
        $region26: #{tpu_custom_call.1} parent=11 // pred_check_branch
          %399 = sbr.rel (%p397) target = $region28
        $region27: #{tpu_custom_call.1} parent=11 // pred_region
          _
        $region28: #{tpu_custom_call.1} parent=11 // pred_fallthru
          _
        // Predicated region
        $region29: #{tpu_custom_call.1} parent=11 // pred_check
          %p400 = pneg %p196
        $region30: #{tpu_custom_call.1} parent=11 // pred_check_branch
          %402 = sbr.rel (%p400) target = $region32
        $region31: #{tpu_custom_call.1} parent=11 // pred_region
          %s404 = ssub.s32 1024, 1024
          %405 = vsyncadd [#allocation11], %s404
          %s406 = sshll.u32 [#allocation12], 4
          %s407 = int_to_ptr.vmem [resolvable:$true] %s406
          %412 = dma.hbm_to_vmem [thread:$0]  %s7, 1024, %s407, [#allocation11], 64, 64, 4
        $region32: #{tpu_custom_call.1} parent=11 // pred_fallthru
          _
        // Predicated region
        $region33: #{tpu_custom_call.1} parent=11 // pred_check
          %p413 = pneg %p217
        $region34: #{tpu_custom_call.1} parent=11 // pred_check_branch
          %415 = sbr.rel (%p413) target = $region36
        $region35: #{tpu_custom_call.1} parent=11 // pred_region
          _
        $region36: #{tpu_custom_call.1} parent=11 // pred_fallthru
          _
        // Predicated region
        $region37: #{tpu_custom_call.1} parent=11 // pred_check
          %p416 = pneg %p238
        $region38: #{tpu_custom_call.1} parent=11 // pred_check_branch
          %418 = sbr.rel (%p416) target = $region40
        $region39: #{tpu_custom_call.1} parent=11 // pred_region
          %s420 = ssub.s32 1024, 1024
          %421 = vsyncadd [#allocation14], %s420
          %s422 = sshll.u32 [#allocation13], 4
          %s423 = int_to_ptr.vmem [resolvable:$true] %s422
          %428 = dma.hbm_to_vmem [thread:$0]  %s9, 1024, %s423, [#allocation14], 64, 64, 4
        $region40: #{tpu_custom_call.1} parent=11 // pred_fallthru
          _
        // Predicated region
        $region41: #{tpu_custom_call.1} parent=11 // pred_check
          %p429 = pneg %p259
        $region42: #{tpu_custom_call.1} parent=11 // pred_check_branch
          %431 = sbr.rel (%p429) target = $region44
        $region43: #{tpu_custom_call.1} parent=11 // pred_region
          _
        $region44: #{tpu_custom_call.1} parent=11 // pred_fallthru
          _
        // Predicated region
        $region45: #{tpu_custom_call.1} parent=11 // pred_check
          %p432 = pneg %p280
        $region46: #{tpu_custom_call.1} parent=11 // pred_check_branch
          %434 = sbr.rel (%p432) target = $region48
        $region47: #{tpu_custom_call.1} parent=11 // pred_region
          %s436 = ssub.s32 1024, 1024
          %437 = vsyncadd [#allocation14], %s436
          %s438 = sshll.u32 [#allocation15], 4
          %s439 = int_to_ptr.vmem [resolvable:$true] %s438
          %444 = dma.hbm_to_vmem [thread:$0]  %s11, 1024, %s439, [#allocation14], 64, 64, 4
        $region48: #{tpu_custom_call.1} parent=11 // pred_fallthru
          _
        // Predicated region
        $region49: #{tpu_custom_call.1} parent=11 // pred_check
          %p445 = pneg %p301
        $region50: #{tpu_custom_call.1} parent=11 // pred_check_branch
          %447 = sbr.rel (%p445) target = $region52
        $region51: #{tpu_custom_call.1} parent=11 // pred_region
          _
        $region52: #{tpu_custom_call.1} parent=11 // pred_fallthru
          _
      $region12: #{tpu_custom_call.1} parent=5 // pred_fallthru
        _
      %p448 = scmp.lt.s32.totalorder %s39, 4
      // Predicated region
      $region53: #{tpu_custom_call.1} parent=5 // pred_check
        %p449 = pneg %p448
      $region54: #{tpu_custom_call.1} parent=5 // pred_check_branch
        %451 = sbr.rel (%p449) target = $region56
      $region55: #{tpu_custom_call.1} parent=5 // pred_region
        // Predicated region
        $region57: #{tpu_custom_call.1} parent=55 // pred_check
          %p452 = pneg %p59
        $region58: #{tpu_custom_call.1} parent=55 // pred_check_branch
          %454 = sbr.rel (%p452) target = $region60
        $region59: #{tpu_custom_call.1} parent=55 // pred_region
          %s455 = sand.u32 %s49, 1
          %s456 = scalar_lea.sflag [#allocation5], %s455
          %s457 = sand.u32 %s49, 1
          %s458 = smul.addr %s457, 64
          %s459 = scalar_lea.vmem [#allocation4], %s458
          %s461 = ssub.s32 1024, 1024
          %462 = vsyncadd %s456, %s461
          %s463 = smul.addr %s39, 16
          %s464 = smul.addr %s463, 64
          %s465 = scalar_lea.hbm %s1, %s464
          %s466 = sshll.u32 %s459, 4
          %s467 = int_to_ptr.vmem [resolvable:$true] %s466
          %472 = dma.hbm_to_vmem [thread:$0]  %s465, 1024, %s467, %s456, 64, 64, 4
        $region60: #{tpu_custom_call.1} parent=55 // pred_fallthru
          _
        // Predicated region
        $region61: #{tpu_custom_call.1} parent=55 // pred_check
          %p473 = pneg %p85
        $region62: #{tpu_custom_call.1} parent=55 // pred_check_branch
          %475 = sbr.rel (%p473) target = $region64
        $region63: #{tpu_custom_call.1} parent=55 // pred_region
          %s476 = sand.u32 %s39, 1
          %s477 = scalar_lea.sflag [#allocation8], %s476
          %s478 = sand.u32 %s75, 1
          %s479 = smul.addr %s478, 128
          %s480 = scalar_lea.vmem [#allocation7], %s479
          %s482 = ssub.s32 2048, 2048
          %483 = vsyncadd %s477, %s482
          %s484 = smul.addr %s39, 16
          %s485 = smul.addr %s484, 128
          %s486 = scalar_lea.hbm %s2, %s485
          %s487 = sshll.u32 %s480, 4
          %s488 = int_to_ptr.vmem [resolvable:$true] %s487
          %493 = dma.hbm_to_vmem [thread:$0]  %s486, 2048, %s488, %s477, 128, 128, 8
        $region64: #{tpu_custom_call.1} parent=55 // pred_fallthru
          _
      $region56: #{tpu_custom_call.1} parent=5 // pred_fallthru
        _
      %p494 = scmp.le.s32.totalorder 1, %s39
      %p495 = scmp.lt.s32.totalorder %s39, 5
      %p496 = pnand %p494, %p495
      %p497 = pneg %p496
      // Predicated region
      $region65: #{tpu_custom_call.1} parent=5 // pred_check
        _
      $region66: #{tpu_custom_call.1} parent=5 // pred_check_branch
        %499 = sbr.rel (%p496) target = $region68
      $region67: #{tpu_custom_call.1} parent=5 // pred_region
        %s500 = ssub.s32 %s39, 1
        %s501 = sand.u32 %s52, 1
        %s502 = scalar_lea.sflag [#allocation5], %s501
        %s503 = sand.u32 %s52, 1
        %s504 = smul.addr %s503, 64
        %s505 = scalar_lea.vmem [#allocation4], %s504
        // Predicated region
        $region69: #{tpu_custom_call.1} parent=67 // pred_check
          %p506 = pneg %p65
        $region70: #{tpu_custom_call.1} parent=67 // pred_check_branch
          %508 = sbr.rel (%p506) target = $region72
        $region71: #{tpu_custom_call.1} parent=67 // pred_region
          %509 = dma.done %s502, 1024
        $region72: #{tpu_custom_call.1} parent=67 // pred_fallthru
          _
        %s510 = sand.u32 %s44, 1
        %s511 = scalar_lea.sflag [#allocation8], %s510
        %s512 = sand.u32 %s78, 1
        %s513 = smul.addr %s512, 128
        %s514 = scalar_lea.vmem [#allocation7], %s513
        // Predicated region
        $region73: #{tpu_custom_call.1} parent=67 // pred_check
          %p515 = pneg %p91
        $region74: #{tpu_custom_call.1} parent=67 // pred_check_branch
          %517 = sbr.rel (%p515) target = $region76
        $region75: #{tpu_custom_call.1} parent=67 // pred_region
          %518 = dma.done %s511, 2048
        $region76: #{tpu_custom_call.1} parent=67 // pred_fallthru
          _
        // Predicated region
        $region77: #{tpu_custom_call.1} parent=67 // pred_check
          %p519 = pneg %p112
        $region78: #{tpu_custom_call.1} parent=67 // pred_check_branch
          %521 = sbr.rel (%p519) target = $region80
        $region79: #{tpu_custom_call.1} parent=67 // pred_region
          %522 = dma.done [#allocation8], 1024
        $region80: #{tpu_custom_call.1} parent=67 // pred_fallthru
          _
        // Predicated region
        $region81: #{tpu_custom_call.1} parent=67 // pred_check
          %p523 = pneg %p154
        $region82: #{tpu_custom_call.1} parent=67 // pred_check_branch
          %525 = sbr.rel (%p523) target = $region84
        $region83: #{tpu_custom_call.1} parent=67 // pred_region
          %526 = dma.done [#allocation11], 1024
        $region84: #{tpu_custom_call.1} parent=67 // pred_fallthru
          _
        // Predicated region
        $region85: #{tpu_custom_call.1} parent=67 // pred_check
          %p527 = pneg %p196
        $region86: #{tpu_custom_call.1} parent=67 // pred_check_branch
          %529 = sbr.rel (%p527) target = $region88
        $region87: #{tpu_custom_call.1} parent=67 // pred_region
          %530 = dma.done [#allocation11], 1024
        $region88: #{tpu_custom_call.1} parent=67 // pred_fallthru
          _
        // Predicated region
        $region89: #{tpu_custom_call.1} parent=67 // pred_check
          %p531 = pneg %p238
        $region90: #{tpu_custom_call.1} parent=67 // pred_check_branch
          %533 = sbr.rel (%p531) target = $region92
        $region91: #{tpu_custom_call.1} parent=67 // pred_region
          %534 = dma.done [#allocation14], 1024
        $region92: #{tpu_custom_call.1} parent=67 // pred_fallthru
          _
        // Predicated region
        $region93: #{tpu_custom_call.1} parent=67 // pred_check
          %p535 = pneg %p280
        $region94: #{tpu_custom_call.1} parent=67 // pred_check_branch
          %537 = sbr.rel (%p535) target = $region96
        $region95: #{tpu_custom_call.1} parent=67 // pred_region
          %538 = dma.done [#allocation14], 1024
        $region96: #{tpu_custom_call.1} parent=67 // pred_fallthru
          _
        %s539 = sand.u32 %s52, 1
        %s540 = scalar_lea.sflag [#allocation5], %s539
        %s541 = sand.u32 %s52, 1
        %s542 = smul.addr %s541, 64
        %s543 = scalar_lea.vmem [#allocation4], %s542
        %p544 = pneg %p65
        %p545 = pneg %p62
        %s546 = sand.u32 %s44, 1
        %s547 = scalar_lea.sflag [#allocation8], %s546
        %s548 = sand.u32 %s78, 1
        %s549 = smul.addr %s548, 128
        %s550 = scalar_lea.vmem [#allocation7], %s549
        %p551 = pneg %p91
        %p552 = pneg %p88
        %p553 = pneg %p112
        %p554 = pneg %p109
        %p555 = pneg %p133
        %p556 = pneg %p130
        %p557 = pneg %p154
        %p558 = pneg %p151
        %p559 = pneg %p175
        %p560 = pneg %p172
        %p561 = pneg %p196
        %p562 = pneg %p193
        %p563 = pneg %p217
        %p564 = pneg %p214
        %p565 = pneg %p238
        %p566 = pneg %p235
        %p567 = pneg %p259
        %p568 = pneg %p256
        %p569 = pneg %p280
        %p570 = pneg %p277
        %p571 = pneg %p301
        %p572 = pneg %p298
        %p573 = pneg %p327
        %p574 = pneg %p324
        %s575 = sand.u32 %s314, 1
        %s576 = scalar_lea.sflag [#allocation6], %s575
        %s577 = sand.u32 %s314, 1
        %s578 = scalar_lea.vmem [#allocation16], %s577
        %p579 = pneg %p353
        %p580 = pneg %p350
        %s581 = sand.u32 %s340, 1
        %s582 = scalar_lea.sflag [#allocation18], %s581
        %s583 = sand.u32 %s340, 1
        %s584 = scalar_lea.vmem [#allocation17], %s583
        %v586 = vld [vmem:[%s505] sm:$0xf]
        %v587 = vld [vmem:[%s505 + $0x4] sm:$0xf]
        %v588 = vld [vmem:[%s505 + $0x8] sm:$0xf]
        %v589 = vld [vmem:[%s505 + $0xc] sm:$0xf]
        %v590 = vld [vmem:[%s505 + $0x10] sm:$0xf]
        %v591 = vld [vmem:[%s505 + $0x14] sm:$0xf]
        %v592 = vld [vmem:[%s505 + $0x18] sm:$0xf]
        %v593 = vld [vmem:[%s505 + $0x1c] sm:$0xf]
        %v594 = vld [vmem:[%s505 + $0x20] sm:$0xf]
        %v595 = vld [vmem:[%s505 + $0x24] sm:$0xf]
        %v596 = vld [vmem:[%s505 + $0x28] sm:$0xf]
        %v597 = vld [vmem:[%s505 + $0x2c] sm:$0xf]
        %v598 = vld [vmem:[%s505 + $0x30] sm:$0xf]
        %v599 = vld [vmem:[%s505 + $0x34] sm:$0xf]
        %v600 = vld [vmem:[%s505 + $0x38] sm:$0xf]
        %v601 = vld [vmem:[%s505 + $0x3c] sm:$0xf]
        %v602 = vld [vmem:[%s514] sm:$0xff]
        %v603 = vld [vmem:[%s514 + $0x8] sm:$0xff]
        %v604 = vld [vmem:[%s514 + $0x10] sm:$0xff]
        %v605 = vld [vmem:[%s514 + $0x18] sm:$0xff]
        %v606 = vld [vmem:[%s514 + $0x20] sm:$0xff]
        %v607 = vld [vmem:[%s514 + $0x28] sm:$0xff]
        %v608 = vld [vmem:[%s514 + $0x30] sm:$0xff]
        %v609 = vld [vmem:[%s514 + $0x38] sm:$0xff]
        %v610 = vld [vmem:[%s514 + $0x40] sm:$0xff]
        %v611 = vld [vmem:[%s514 + $0x48] sm:$0xff]
        %v612 = vld [vmem:[%s514 + $0x50] sm:$0xff]
        %v613 = vld [vmem:[%s514 + $0x58] sm:$0xff]
        %v614 = vld [vmem:[%s514 + $0x60] sm:$0xff]
        %v615 = vld [vmem:[%s514 + $0x68] sm:$0xff]
        %v616 = vld [vmem:[%s514 + $0x70] sm:$0xff]
        %v617 = vld [vmem:[%s514 + $0x78] sm:$0xff]
        %v618 = vpack.c.bf16 %v603, %v602
        %v619 = vpack.c.bf16 %v605, %v604
        %v620 = vpack.c.bf16 %v607, %v606
        %v621 = vpack.c.bf16 %v609, %v608
        %v622 = vpack.c.bf16 %v611, %v610
        %v623 = vpack.c.bf16 %v613, %v612
        %v624 = vpack.c.bf16 %v615, %v614
        %v625 = vpack.c.bf16 %v617, %v616
        %v642 = vunpack.c.l.b16 %v586
        %v643 = vunpack.c.l.b16 %v587
        %v644 = vunpack.c.l.b16 %v588
        %v645 = vunpack.c.l.b16 %v589
        %v646 = vunpack.c.l.b16 %v590
        %v647 = vunpack.c.l.b16 %v591
        %v648 = vunpack.c.l.b16 %v592
        %v649 = vunpack.c.l.b16 %v593
        %v650 = vunpack.c.l.b16 %v594
        %v651 = vunpack.c.l.b16 %v595
        %v652 = vunpack.c.l.b16 %v596
        %v653 = vunpack.c.l.b16 %v597
        %v654 = vunpack.c.l.b16 %v598
        %v655 = vunpack.c.l.b16 %v599
        %v656 = vunpack.c.l.b16 %v600
        %v657 = vunpack.c.l.b16 %v601
        %v658 = vpack.c.b16 %v643, %v642
        %v659 = vpack.c.b16 %v645, %v644
        %v660 = vpack.c.b16 %v647, %v646
        %v661 = vpack.c.b16 %v649, %v648
        %v662 = vpack.c.b16 %v651, %v650
        %v663 = vpack.c.b16 %v653, %v652
        %v664 = vpack.c.b16 %v655, %v654
        %v665 = vpack.c.b16 %v657, %v656
        %674 = vmatprep.subr.bf16.mxu0 0
        %675 = vmatpush1.bf16.msra.mxu0 %v618
        %676 = vmatprep.subr.bf16.mxu0 0
        %677 = vmatpush1.bf16.msra.mxu0 %v619
        %678 = vmatprep.subr.bf16.mxu0 0
        %679 = vmatpush1.bf16.msra.mxu0 %v620
        %680 = vmatprep.subr.bf16.mxu0 0
        %681 = vmatpush1.bf16.msra.mxu0 %v621
        %682 = vmatprep.subr.bf16.mxu0 0
        %683 = vmatpush1.bf16.msra.mxu0 %v622
        %684 = vmatprep.subr.bf16.mxu0 0
        %685 = vmatpush1.bf16.msra.mxu0 %v623
        %686 = vmatprep.subr.bf16.mxu0 0
        %687 = vmatpush1.bf16.msra.mxu0 %v624
        %688 = vmatprep.subr.bf16.mxu0 0
        %689 = vmatpush1.bf16.msra.mxu0 %v625
        %690 = vmatprep.subr.bf16.mxu0 0
        %691 = vmatpush1.bf16.msra.mxu0 0
        %692 = vmatprep.subr.bf16.mxu0 0
        %693 = vmatpush1.bf16.msra.mxu0 0
        %694 = vmatprep.subr.bf16.mxu0 0
        %695 = vmatpush1.bf16.msra.mxu0 0
        %696 = vmatprep.subr.bf16.mxu0 0
        %697 = vmatpush1.bf16.msra.mxu0 0
        %698 = vmatprep.subr.bf16.mxu0 0
        %699 = vmatpush1.bf16.msra.mxu0 0
        %700 = vmatprep.subr.bf16.mxu0 0
        %701 = vmatpush1.bf16.msra.mxu0 0
        %702 = vmatprep.subr.bf16.mxu0 0
        %703 = vmatpush1.bf16.msra.mxu0 0
        %704 = vmatprep.subr.bf16.mxu0 0
        %705 = vmatpush1.bf16.msra.mxu0 0
        %706 = vmatprep.mubr.bf16.mxu0 0
        %707 = vmatmul.mubr.bf16.gmra.mrb[0].mxu0 %v658
        %v708 = vpop.f32.mrb[0].mxu0
        %v709 = vadd.f32 0.0, %v708
        %v710 = vpop.f32.mrb[0].mxu0
        %v711 = vpop.f32.mrb[0].mxu0
        %v712 = vadd.f32 0.0, %v711
        %v713 = vpop.f32.mrb[0].mxu0
        %714 = vmatprep.mubr.bf16.mxu0 0
        %715 = vmatmul.mubr.bf16.gmra.mrb[0].mxu0 %v659
        %v716 = vpop.f32.mrb[0].mxu0
        %v717 = vadd.f32 0.0, %v716
        %v718 = vpop.f32.mrb[0].mxu0
        %v719 = vpop.f32.mrb[0].mxu0
        %v720 = vadd.f32 0.0, %v719
        %v721 = vpop.f32.mrb[0].mxu0
        %722 = vmatprep.mubr.bf16.mxu0 0
        %723 = vmatmul.mubr.bf16.gmra.mrb[0].mxu0 %v660
        %v724 = vpop.f32.mrb[0].mxu0
        %v725 = vadd.f32 0.0, %v724
        %v726 = vpop.f32.mrb[0].mxu0
        %v727 = vpop.f32.mrb[0].mxu0
        %v728 = vadd.f32 0.0, %v727
        %v729 = vpop.f32.mrb[0].mxu0
        %730 = vmatprep.mubr.bf16.mxu0 0
        %731 = vmatmul.mubr.bf16.gmra.mrb[0].mxu0 %v661
        %v732 = vpop.f32.mrb[0].mxu0
        %v733 = vadd.f32 0.0, %v732
        %v734 = vpop.f32.mrb[0].mxu0
        %v735 = vpop.f32.mrb[0].mxu0
        %v736 = vadd.f32 0.0, %v735
        %v737 = vpop.f32.mrb[0].mxu0
        %738 = vmatprep.mubr.bf16.mxu0 0
        %739 = vmatmul.mubr.bf16.gmra.mrb[0].mxu0 %v662
        %v740 = vpop.f32.mrb[0].mxu0
        %v741 = vadd.f32 0.0, %v740
        %v742 = vpop.f32.mrb[0].mxu0
        %v743 = vpop.f32.mrb[0].mxu0
        %v744 = vadd.f32 0.0, %v743
        %v745 = vpop.f32.mrb[0].mxu0
        %746 = vmatprep.mubr.bf16.mxu0 0
        %747 = vmatmul.mubr.bf16.gmra.mrb[0].mxu0 %v663
        %v748 = vpop.f32.mrb[0].mxu0
        %v749 = vadd.f32 0.0, %v748
        %v750 = vpop.f32.mrb[0].mxu0
        %v751 = vpop.f32.mrb[0].mxu0
        %v752 = vadd.f32 0.0, %v751
        %v753 = vpop.f32.mrb[0].mxu0
        %754 = vmatprep.mubr.bf16.mxu0 0
        %755 = vmatmul.mubr.bf16.gmra.mrb[0].mxu0 %v664
        %v756 = vpop.f32.mrb[0].mxu0
        %v757 = vadd.f32 0.0, %v756
        %v758 = vpop.f32.mrb[0].mxu0
        %v759 = vpop.f32.mrb[0].mxu0
        %v760 = vadd.f32 0.0, %v759
        %v761 = vpop.f32.mrb[0].mxu0
        %762 = vmatprep.mubr.bf16.mxu0 0
        %763 = vmatmul.mubr.bf16.gmra.mrb[0].mxu0 %v665
        %v764 = vpop.f32.mrb[0].mxu0
        %v765 = vadd.f32 0.0, %v764
        %v766 = vpop.f32.mrb[0].mxu0
        %v767 = vpop.f32.mrb[0].mxu0
        %v768 = vadd.f32 0.0, %v767
        %v769 = vpop.f32.mrb[0].mxu0
        %770 = vdwg.mxu0
        %v771 = vpack.c.bf16 %v712, %v709
        %v772 = vpack.c.bf16 %v720, %v717
        %v773 = vpack.c.bf16 %v728, %v725
        %v774 = vpack.c.bf16 %v736, %v733
        %v775 = vpack.c.bf16 %v744, %v741
        %v776 = vpack.c.bf16 %v752, %v749
        %v777 = vpack.c.bf16 %v760, %v757
        %v778 = vpack.c.bf16 %v768, %v765
        %v779 = vld [vmem:[#allocation9] sm:$0xf]
        %v780 = vld [vmem:[#allocation9 + $0x4] sm:$0xf]
        %v781 = vld [vmem:[#allocation9 + $0x8] sm:$0xf]
        %v782 = vld [vmem:[#allocation9 + $0xc] sm:$0xf]
        %v783 = vld [vmem:[#allocation9 + $0x10] sm:$0xf]
        %v784 = vld [vmem:[#allocation9 + $0x14] sm:$0xf]
        %v785 = vld [vmem:[#allocation9 + $0x18] sm:$0xf]
        %v786 = vld [vmem:[#allocation9 + $0x1c] sm:$0xf]
        %v787 = vld [vmem:[#allocation9 + $0x20] sm:$0xf]
        %v788 = vld [vmem:[#allocation9 + $0x24] sm:$0xf]
        %v789 = vld [vmem:[#allocation9 + $0x28] sm:$0xf]
        %v790 = vld [vmem:[#allocation9 + $0x2c] sm:$0xf]
        %v791 = vld [vmem:[#allocation9 + $0x30] sm:$0xf]
        %v792 = vld [vmem:[#allocation9 + $0x34] sm:$0xf]
        %v793 = vld [vmem:[#allocation9 + $0x38] sm:$0xf]
        %v794 = vld [vmem:[#allocation9 + $0x3c] sm:$0xf]
        %v795 = vld [vmem:[%s4] sm:$0x1]
        %v797 = vlaneseq
        %v798 = vshrl.u32 %v797, 7
        %v799 = vsub.s32 0, %v798
        %v800 = vrot.slane %v795, %v799
        %v818 = vunpack.c.l.b16 %v779
        %v819 = vunpack.c.l.b16 %v780
        %v820 = vunpack.c.l.b16 %v781
        %v821 = vunpack.c.l.b16 %v782
        %v822 = vunpack.c.l.b16 %v783
        %v823 = vunpack.c.l.b16 %v784
        %v824 = vunpack.c.l.b16 %v785
        %v825 = vunpack.c.l.b16 %v786
        %v826 = vunpack.c.l.b16 %v787
        %v827 = vunpack.c.l.b16 %v788
        %v828 = vunpack.c.l.b16 %v789
        %v829 = vunpack.c.l.b16 %v790
        %v830 = vunpack.c.l.b16 %v791
        %v831 = vunpack.c.l.b16 %v792
        %v832 = vunpack.c.l.b16 %v793
        %v833 = vunpack.c.l.b16 %v794
        %v834 = vpack.c.b16 %v819, %v818
        %v835 = vpack.c.b16 %v821, %v820
        %v836 = vpack.c.b16 %v823, %v822
        %v837 = vpack.c.b16 %v825, %v824
        %v838 = vpack.c.b16 %v827, %v826
        %v839 = vpack.c.b16 %v829, %v828
        %v840 = vpack.c.b16 %v831, %v830
        %v841 = vpack.c.b16 %v833, %v832
        %850 = vmatprep.subr.bf16.mxu0 0
        %851 = vmatpush1.bf16.msra.mxu0 %v834
        %852 = vmatprep.subr.bf16.mxu0 0
        %853 = vmatpush1.bf16.msra.mxu0 %v835
        %854 = vmatprep.subr.bf16.mxu0 0
        %855 = vmatpush1.bf16.msra.mxu0 %v836
        %856 = vmatprep.subr.bf16.mxu0 0
        %857 = vmatpush1.bf16.msra.mxu0 %v837
        %858 = vmatprep.subr.bf16.mxu0 0
        %859 = vmatpush1.bf16.msra.mxu0 %v838
        %860 = vmatprep.subr.bf16.mxu0 0
        %861 = vmatpush1.bf16.msra.mxu0 %v839
        %862 = vmatprep.subr.bf16.mxu0 0
        %863 = vmatpush1.bf16.msra.mxu0 %v840
        %864 = vmatprep.subr.bf16.mxu0 0
        %865 = vmatpush1.bf16.msra.mxu0 %v841
        %866 = vmatprep.subr.bf16.mxu0 0
        %867 = vmatpush1.bf16.msra.mxu0 0
        %868 = vmatprep.subr.bf16.mxu0 0
        %869 = vmatpush1.bf16.msra.mxu0 0
        %870 = vmatprep.subr.bf16.mxu0 0
        %871 = vmatpush1.bf16.msra.mxu0 0
        %872 = vmatprep.subr.bf16.mxu0 0
        %873 = vmatpush1.bf16.msra.mxu0 0
        %874 = vmatprep.subr.bf16.mxu0 0
        %875 = vmatpush1.bf16.msra.mxu0 0
        %876 = vmatprep.subr.bf16.mxu0 0
        %877 = vmatpush1.bf16.msra.mxu0 0
        %878 = vmatprep.subr.bf16.mxu0 0
        %879 = vmatpush1.bf16.msra.mxu0 0
        %880 = vmatprep.subr.bf16.mxu0 0
        %881 = vmatpush1.bf16.msra.mxu0 0
        %882 = vmatprep.mubr.bf16.mxu0 0
        %883 = vmatmul.mubr.bf16.gmra.mrb[0].mxu0 %v771
        %v884 = vpop.f32.mrb[0].mxu0
        %v885 = vadd.f32 %v800, %v884
        %v886 = vpop.f32.mrb[0].mxu0
        %v887 = vpop.f32.mrb[0].mxu0
        %v888 = vadd.f32 %v800, %v887
        %v889 = vpop.f32.mrb[0].mxu0
        %890 = vmatprep.mubr.bf16.mxu0 0
        %891 = vmatmul.mubr.bf16.gmra.mrb[0].mxu0 %v772
        %v892 = vpop.f32.mrb[0].mxu0
        %v893 = vadd.f32 %v800, %v892
        %v894 = vpop.f32.mrb[0].mxu0
        %v895 = vpop.f32.mrb[0].mxu0
        %v896 = vadd.f32 %v800, %v895
        %v897 = vpop.f32.mrb[0].mxu0
        %898 = vmatprep.mubr.bf16.mxu0 0
        %899 = vmatmul.mubr.bf16.gmra.mrb[0].mxu0 %v773
        %v900 = vpop.f32.mrb[0].mxu0
        %v901 = vadd.f32 %v800, %v900
        %v902 = vpop.f32.mrb[0].mxu0
        %v903 = vpop.f32.mrb[0].mxu0
        %v904 = vadd.f32 %v800, %v903
        %v905 = vpop.f32.mrb[0].mxu0
        %906 = vmatprep.mubr.bf16.mxu0 0
        %907 = vmatmul.mubr.bf16.gmra.mrb[0].mxu0 %v774
        %v908 = vpop.f32.mrb[0].mxu0
        %v909 = vadd.f32 %v800, %v908
        %v910 = vpop.f32.mrb[0].mxu0
        %v911 = vpop.f32.mrb[0].mxu0
        %v912 = vadd.f32 %v800, %v911
        %v913 = vpop.f32.mrb[0].mxu0
        %914 = vmatprep.mubr.bf16.mxu0 0
        %915 = vmatmul.mubr.bf16.gmra.mrb[0].mxu0 %v775
        %v916 = vpop.f32.mrb[0].mxu0
        %v917 = vadd.f32 %v800, %v916
        %v918 = vpop.f32.mrb[0].mxu0
        %v919 = vpop.f32.mrb[0].mxu0
        %v920 = vadd.f32 %v800, %v919
        %v921 = vpop.f32.mrb[0].mxu0
        %922 = vmatprep.mubr.bf16.mxu0 0
        %923 = vmatmul.mubr.bf16.gmra.mrb[0].mxu0 %v776
        %v924 = vpop.f32.mrb[0].mxu0
        %v925 = vadd.f32 %v800, %v924
        %v926 = vpop.f32.mrb[0].mxu0
        %v927 = vpop.f32.mrb[0].mxu0
        %v928 = vadd.f32 %v800, %v927
        %v929 = vpop.f32.mrb[0].mxu0
        %930 = vmatprep.mubr.bf16.mxu0 0
        %931 = vmatmul.mubr.bf16.gmra.mrb[0].mxu0 %v777
        %v932 = vpop.f32.mrb[0].mxu0
        %v933 = vadd.f32 %v800, %v932
        %v934 = vpop.f32.mrb[0].mxu0
        %v935 = vpop.f32.mrb[0].mxu0
        %v936 = vadd.f32 %v800, %v935
        %v937 = vpop.f32.mrb[0].mxu0
        %938 = vmatprep.mubr.bf16.mxu0 0
        %939 = vmatmul.mubr.bf16.gmra.mrb[0].mxu0 %v778
        %v940 = vpop.f32.mrb[0].mxu0
        %v941 = vadd.f32 %v800, %v940
        %v942 = vpop.f32.mrb[0].mxu0
        %v943 = vpop.f32.mrb[0].mxu0
        %v944 = vadd.f32 %v800, %v943
        %v945 = vpop.f32.mrb[0].mxu0
        %946 = vdwg.mxu0
        %v947 = vmax.f32 %v885, 0.0
        %v948 = vmax.f32 %v888, 0.0
        %v949 = vmax.f32 %v893, 0.0
        %v950 = vmax.f32 %v896, 0.0
        %v951 = vmax.f32 %v901, 0.0
        %v952 = vmax.f32 %v904, 0.0
        %v953 = vmax.f32 %v909, 0.0
        %v954 = vmax.f32 %v912, 0.0
        %v955 = vmax.f32 %v917, 0.0
        %v956 = vmax.f32 %v920, 0.0
        %v957 = vmax.f32 %v925, 0.0
        %v958 = vmax.f32 %v928, 0.0
        %v959 = vmax.f32 %v933, 0.0
        %v960 = vmax.f32 %v936, 0.0
        %v961 = vmax.f32 %v941, 0.0
        %v962 = vmax.f32 %v944, 0.0
        %v963 = vpack.c.bf16 %v948, %v947
        %v964 = vpack.c.bf16 %v950, %v949
        %v965 = vpack.c.bf16 %v952, %v951
        %v966 = vpack.c.bf16 %v954, %v953
        %v967 = vpack.c.bf16 %v956, %v955
        %v968 = vpack.c.bf16 %v958, %v957
        %v969 = vpack.c.bf16 %v960, %v959
        %v970 = vpack.c.bf16 %v962, %v961
        %971 = vmatprep.subr.bf16.mxu0 0
        %972 = vmatpush1.bf16.msra.mxu0 %v963
        %973 = vmatprep.subr.bf16.mxu0 0
        %974 = vmatpush1.bf16.msra.mxu0 %v964
        %975 = vmatprep.subr.bf16.mxu0 0
        %976 = vmatpush1.bf16.msra.mxu0 %v965
        %977 = vmatprep.subr.bf16.mxu0 0
        %978 = vmatpush1.bf16.msra.mxu0 %v966
        %979 = vmatprep.subr.bf16.mxu0 0
        %980 = vmatpush1.bf16.msra.mxu0 %v967
        %981 = vmatprep.subr.bf16.mxu0 0
        %982 = vmatpush1.bf16.msra.mxu0 %v968
        %983 = vmatprep.subr.bf16.mxu0 0
        %984 = vmatpush1.bf16.msra.mxu0 %v969
        %985 = vmatprep.subr.bf16.mxu0 0
        %986 = vmatpush1.bf16.msra.mxu0 %v970
        %987 = vmatprep.subr.bf16.mxu0 0
        %988 = vmatpush1.bf16.msra.mxu0 0
        %989 = vmatprep.subr.bf16.mxu0 0
        %990 = vmatpush1.bf16.msra.mxu0 0
        %991 = vmatprep.subr.bf16.mxu0 0
        %992 = vmatpush1.bf16.msra.mxu0 0
        %993 = vmatprep.subr.bf16.mxu0 0
        %994 = vmatpush1.bf16.msra.mxu0 0
        %995 = vmatprep.subr.bf16.mxu0 0
        %996 = vmatpush1.bf16.msra.mxu0 0
        %997 = vmatprep.subr.bf16.mxu0 0
        %998 = vmatpush1.bf16.msra.mxu0 0
        %999 = vmatprep.subr.bf16.mxu0 0
        %1000 = vmatpush1.bf16.msra.mxu0 0
        %1001 = vmatprep.subr.bf16.mxu0 0
        %1002 = vmatpush1.bf16.msra.mxu0 0
        %1003 = vmatprep.mubr.bf16.mxu0 0
        %1004 = vmatmul.mubr.bf16.gmra.mrb[0].mxu0 %v658
        %v1005 = vpop.f32.mrb[0].mxu0
        %v1006 = vadd.f32 0.0, %v1005
        %v1007 = vpop.f32.mrb[0].mxu0
        %v1008 = vpop.f32.mrb[0].mxu0
        %v1009 = vadd.f32 0.0, %v1008
        %v1010 = vpop.f32.mrb[0].mxu0
        %1011 = vmatprep.mubr.bf16.mxu0 0
        %1012 = vmatmul.mubr.bf16.gmra.mrb[0].mxu0 %v659
        %v1013 = vpop.f32.mrb[0].mxu0
        %v1014 = vadd.f32 0.0, %v1013
        %v1015 = vpop.f32.mrb[0].mxu0
        %v1016 = vpop.f32.mrb[0].mxu0
        %v1017 = vadd.f32 0.0, %v1016
        %v1018 = vpop.f32.mrb[0].mxu0
        %1019 = vmatprep.mubr.bf16.mxu0 0
        %1020 = vmatmul.mubr.bf16.gmra.mrb[0].mxu0 %v660
        %v1021 = vpop.f32.mrb[0].mxu0
        %v1022 = vadd.f32 0.0, %v1021
        %v1023 = vpop.f32.mrb[0].mxu0
        %v1024 = vpop.f32.mrb[0].mxu0
        %v1025 = vadd.f32 0.0, %v1024
        %v1026 = vpop.f32.mrb[0].mxu0
        %1027 = vmatprep.mubr.bf16.mxu0 0
        %1028 = vmatmul.mubr.bf16.gmra.mrb[0].mxu0 %v661
        %v1029 = vpop.f32.mrb[0].mxu0
        %v1030 = vadd.f32 0.0, %v1029
        %v1031 = vpop.f32.mrb[0].mxu0
        %v1032 = vpop.f32.mrb[0].mxu0
        %v1033 = vadd.f32 0.0, %v1032
        %v1034 = vpop.f32.mrb[0].mxu0
        %1035 = vmatprep.mubr.bf16.mxu0 0
        %1036 = vmatmul.mubr.bf16.gmra.mrb[0].mxu0 %v662
        %v1037 = vpop.f32.mrb[0].mxu0
        %v1038 = vadd.f32 0.0, %v1037
        %v1039 = vpop.f32.mrb[0].mxu0
        %v1040 = vpop.f32.mrb[0].mxu0
        %v1041 = vadd.f32 0.0, %v1040
        %v1042 = vpop.f32.mrb[0].mxu0
        %1043 = vmatprep.mubr.bf16.mxu0 0
        %1044 = vmatmul.mubr.bf16.gmra.mrb[0].mxu0 %v663
        %v1045 = vpop.f32.mrb[0].mxu0
        %v1046 = vadd.f32 0.0, %v1045
        %v1047 = vpop.f32.mrb[0].mxu0
        %v1048 = vpop.f32.mrb[0].mxu0
        %v1049 = vadd.f32 0.0, %v1048
        %v1050 = vpop.f32.mrb[0].mxu0
        %1051 = vmatprep.mubr.bf16.mxu0 0
        %1052 = vmatmul.mubr.bf16.gmra.mrb[0].mxu0 %v664
        %v1053 = vpop.f32.mrb[0].mxu0
        %v1054 = vadd.f32 0.0, %v1053
        %v1055 = vpop.f32.mrb[0].mxu0
        %v1056 = vpop.f32.mrb[0].mxu0
        %v1057 = vadd.f32 0.0, %v1056
        %v1058 = vpop.f32.mrb[0].mxu0
        %1059 = vmatprep.mubr.bf16.mxu0 0
        %1060 = vmatmul.mubr.bf16.gmra.mrb[0].mxu0 %v665
        %v1061 = vpop.f32.mrb[0].mxu0
        %v1062 = vadd.f32 0.0, %v1061
        %v1063 = vpop.f32.mrb[0].mxu0
        %v1064 = vpop.f32.mrb[0].mxu0
        %v1065 = vadd.f32 0.0, %v1064
        %v1066 = vpop.f32.mrb[0].mxu0
        %1067 = vdwg.mxu0
        %v1068 = vpack.c.bf16 %v1009, %v1006
        %v1069 = vpack.c.bf16 %v1017, %v1014
        %v1070 = vpack.c.bf16 %v1025, %v1022
        %v1071 = vpack.c.bf16 %v1033, %v1030
        %v1072 = vpack.c.bf16 %v1041, %v1038
        %v1073 = vpack.c.bf16 %v1049, %v1046
        %v1074 = vpack.c.bf16 %v1057, %v1054
        %v1075 = vpack.c.bf16 %v1065, %v1062
        %v1076 = vld [vmem:[#allocation10] sm:$0xf]
        %v1077 = vld [vmem:[#allocation10 + $0x4] sm:$0xf]
        %v1078 = vld [vmem:[#allocation10 + $0x8] sm:$0xf]
        %v1079 = vld [vmem:[#allocation10 + $0xc] sm:$0xf]
        %v1080 = vld [vmem:[#allocation10 + $0x10] sm:$0xf]
        %v1081 = vld [vmem:[#allocation10 + $0x14] sm:$0xf]
        %v1082 = vld [vmem:[#allocation10 + $0x18] sm:$0xf]
        %v1083 = vld [vmem:[#allocation10 + $0x1c] sm:$0xf]
        %v1084 = vld [vmem:[#allocation10 + $0x20] sm:$0xf]
        %v1085 = vld [vmem:[#allocation10 + $0x24] sm:$0xf]
        %v1086 = vld [vmem:[#allocation10 + $0x28] sm:$0xf]
        %v1087 = vld [vmem:[#allocation10 + $0x2c] sm:$0xf]
        %v1088 = vld [vmem:[#allocation10 + $0x30] sm:$0xf]
        %v1089 = vld [vmem:[#allocation10 + $0x34] sm:$0xf]
        %v1090 = vld [vmem:[#allocation10 + $0x38] sm:$0xf]
        %v1091 = vld [vmem:[#allocation10 + $0x3c] sm:$0xf]
        %v1092 = vld [vmem:[%s6] sm:$0x1]
        %v1094 = vlaneseq
        %v1095 = vshrl.u32 %v1094, 7
        %v1096 = vsub.s32 0, %v1095
        %v1097 = vrot.slane %v1092, %v1096
        %v1115 = vunpack.c.l.b16 %v1076
        %v1116 = vunpack.c.l.b16 %v1077
        %v1117 = vunpack.c.l.b16 %v1078
        %v1118 = vunpack.c.l.b16 %v1079
        %v1119 = vunpack.c.l.b16 %v1080
        %v1120 = vunpack.c.l.b16 %v1081
        %v1121 = vunpack.c.l.b16 %v1082
        %v1122 = vunpack.c.l.b16 %v1083
        %v1123 = vunpack.c.l.b16 %v1084
        %v1124 = vunpack.c.l.b16 %v1085
        %v1125 = vunpack.c.l.b16 %v1086
        %v1126 = vunpack.c.l.b16 %v1087
        %v1127 = vunpack.c.l.b16 %v1088
        %v1128 = vunpack.c.l.b16 %v1089
        %v1129 = vunpack.c.l.b16 %v1090
        %v1130 = vunpack.c.l.b16 %v1091
        %v1131 = vpack.c.b16 %v1116, %v1115
        %v1132 = vpack.c.b16 %v1118, %v1117
        %v1133 = vpack.c.b16 %v1120, %v1119
        %v1134 = vpack.c.b16 %v1122, %v1121
        %v1135 = vpack.c.b16 %v1124, %v1123
        %v1136 = vpack.c.b16 %v1126, %v1125
        %v1137 = vpack.c.b16 %v1128, %v1127
        %v1138 = vpack.c.b16 %v1130, %v1129
        %1147 = vmatprep.subr.bf16.mxu0 0
        %1148 = vmatpush1.bf16.msra.mxu0 %v1131
        %1149 = vmatprep.subr.bf16.mxu0 0
        %1150 = vmatpush1.bf16.msra.mxu0 %v1132
        %1151 = vmatprep.subr.bf16.mxu0 0
        %1152 = vmatpush1.bf16.msra.mxu0 %v1133
        %1153 = vmatprep.subr.bf16.mxu0 0
        %1154 = vmatpush1.bf16.msra.mxu0 %v1134
        %1155 = vmatprep.subr.bf16.mxu0 0
        %1156 = vmatpush1.bf16.msra.mxu0 %v1135
        %1157 = vmatprep.subr.bf16.mxu0 0
        %1158 = vmatpush1.bf16.msra.mxu0 %v1136
        %1159 = vmatprep.subr.bf16.mxu0 0
        %1160 = vmatpush1.bf16.msra.mxu0 %v1137
        %1161 = vmatprep.subr.bf16.mxu0 0
        %1162 = vmatpush1.bf16.msra.mxu0 %v1138
        %1163 = vmatprep.subr.bf16.mxu0 0
        %1164 = vmatpush1.bf16.msra.mxu0 0
        %1165 = vmatprep.subr.bf16.mxu0 0
        %1166 = vmatpush1.bf16.msra.mxu0 0
        %1167 = vmatprep.subr.bf16.mxu0 0
        %1168 = vmatpush1.bf16.msra.mxu0 0
        %1169 = vmatprep.subr.bf16.mxu0 0
        %1170 = vmatpush1.bf16.msra.mxu0 0
        %1171 = vmatprep.subr.bf16.mxu0 0
        %1172 = vmatpush1.bf16.msra.mxu0 0
        %1173 = vmatprep.subr.bf16.mxu0 0
        %1174 = vmatpush1.bf16.msra.mxu0 0
        %1175 = vmatprep.subr.bf16.mxu0 0
        %1176 = vmatpush1.bf16.msra.mxu0 0
        %1177 = vmatprep.subr.bf16.mxu0 0
        %1178 = vmatpush1.bf16.msra.mxu0 0
        %1179 = vmatprep.mubr.bf16.mxu0 0
        %1180 = vmatmul.mubr.bf16.gmra.mrb[0].mxu0 %v1068
        %v1181 = vpop.f32.mrb[0].mxu0
        %v1182 = vadd.f32 %v1097, %v1181
        %v1183 = vpop.f32.mrb[0].mxu0
        %v1184 = vpop.f32.mrb[0].mxu0
        %v1185 = vadd.f32 %v1097, %v1184
        %v1186 = vpop.f32.mrb[0].mxu0
        %1187 = vmatprep.mubr.bf16.mxu0 0
        %1188 = vmatmul.mubr.bf16.gmra.mrb[0].mxu0 %v1069
        %v1189 = vpop.f32.mrb[0].mxu0
        %v1190 = vadd.f32 %v1097, %v1189
        %v1191 = vpop.f32.mrb[0].mxu0
        %v1192 = vpop.f32.mrb[0].mxu0
        %v1193 = vadd.f32 %v1097, %v1192
        %v1194 = vpop.f32.mrb[0].mxu0
        %1195 = vmatprep.mubr.bf16.mxu0 0
        %1196 = vmatmul.mubr.bf16.gmra.mrb[0].mxu0 %v1070
        %v1197 = vpop.f32.mrb[0].mxu0
        %v1198 = vadd.f32 %v1097, %v1197
        %v1199 = vpop.f32.mrb[0].mxu0
        %v1200 = vpop.f32.mrb[0].mxu0
        %v1201 = vadd.f32 %v1097, %v1200
        %v1202 = vpop.f32.mrb[0].mxu0
        %1203 = vmatprep.mubr.bf16.mxu0 0
        %1204 = vmatmul.mubr.bf16.gmra.mrb[0].mxu0 %v1071
        %v1205 = vpop.f32.mrb[0].mxu0
        %v1206 = vadd.f32 %v1097, %v1205
        %v1207 = vpop.f32.mrb[0].mxu0
        %v1208 = vpop.f32.mrb[0].mxu0
        %v1209 = vadd.f32 %v1097, %v1208
        %v1210 = vpop.f32.mrb[0].mxu0
        %1211 = vmatprep.mubr.bf16.mxu0 0
        %1212 = vmatmul.mubr.bf16.gmra.mrb[0].mxu0 %v1072
        %v1213 = vpop.f32.mrb[0].mxu0
        %v1214 = vadd.f32 %v1097, %v1213
        %v1215 = vpop.f32.mrb[0].mxu0
        %v1216 = vpop.f32.mrb[0].mxu0
        %v1217 = vadd.f32 %v1097, %v1216
        %v1218 = vpop.f32.mrb[0].mxu0
        %1219 = vmatprep.mubr.bf16.mxu0 0
        %1220 = vmatmul.mubr.bf16.gmra.mrb[0].mxu0 %v1073
        %v1221 = vpop.f32.mrb[0].mxu0
        %v1222 = vadd.f32 %v1097, %v1221
        %v1223 = vpop.f32.mrb[0].mxu0
        %v1224 = vpop.f32.mrb[0].mxu0
        %v1225 = vadd.f32 %v1097, %v1224
        %v1226 = vpop.f32.mrb[0].mxu0
        %1227 = vmatprep.mubr.bf16.mxu0 0
        %1228 = vmatmul.mubr.bf16.gmra.mrb[0].mxu0 %v1074
        %v1229 = vpop.f32.mrb[0].mxu0
        %v1230 = vadd.f32 %v1097, %v1229
        %v1231 = vpop.f32.mrb[0].mxu0
        %v1232 = vpop.f32.mrb[0].mxu0
        %v1233 = vadd.f32 %v1097, %v1232
        %v1234 = vpop.f32.mrb[0].mxu0
        %1235 = vmatprep.mubr.bf16.mxu0 0
        %1236 = vmatmul.mubr.bf16.gmra.mrb[0].mxu0 %v1075
        %v1237 = vpop.f32.mrb[0].mxu0
        %v1238 = vadd.f32 %v1097, %v1237
        %v1239 = vpop.f32.mrb[0].mxu0
        %v1240 = vpop.f32.mrb[0].mxu0
        %v1241 = vadd.f32 %v1097, %v1240
        %v1242 = vpop.f32.mrb[0].mxu0
        %1243 = vdwg.mxu0
        %v1244 = vmax.f32 %v1182, 0.0
        %v1245 = vmax.f32 %v1185, 0.0
        %v1246 = vmax.f32 %v1190, 0.0
        %v1247 = vmax.f32 %v1193, 0.0
        %v1248 = vmax.f32 %v1198, 0.0
        %v1249 = vmax.f32 %v1201, 0.0
        %v1250 = vmax.f32 %v1206, 0.0
        %v1251 = vmax.f32 %v1209, 0.0
        %v1252 = vmax.f32 %v1214, 0.0
        %v1253 = vmax.f32 %v1217, 0.0
        %v1254 = vmax.f32 %v1222, 0.0
        %v1255 = vmax.f32 %v1225, 0.0
        %v1256 = vmax.f32 %v1230, 0.0
        %v1257 = vmax.f32 %v1233, 0.0
        %v1258 = vmax.f32 %v1238, 0.0
        %v1259 = vmax.f32 %v1241, 0.0
        %v1260 = vpack.c.bf16 %v1245, %v1244
        %v1261 = vpack.c.bf16 %v1247, %v1246
        %v1262 = vpack.c.bf16 %v1249, %v1248
        %v1263 = vpack.c.bf16 %v1251, %v1250
        %v1264 = vpack.c.bf16 %v1253, %v1252
        %v1265 = vpack.c.bf16 %v1255, %v1254
        %v1266 = vpack.c.bf16 %v1257, %v1256
        %v1267 = vpack.c.bf16 %v1259, %v1258
        %1268 = vmatprep.subr.bf16.mxu0 0
        %1269 = vmatpush1.bf16.msra.mxu0 %v1260
        %1270 = vmatprep.subr.bf16.mxu0 0
        %1271 = vmatpush1.bf16.msra.mxu0 %v1261
        %1272 = vmatprep.subr.bf16.mxu0 0
        %1273 = vmatpush1.bf16.msra.mxu0 %v1262
        %1274 = vmatprep.subr.bf16.mxu0 0
        %1275 = vmatpush1.bf16.msra.mxu0 %v1263
        %1276 = vmatprep.subr.bf16.mxu0 0
        %1277 = vmatpush1.bf16.msra.mxu0 %v1264
        %1278 = vmatprep.subr.bf16.mxu0 0
        %1279 = vmatpush1.bf16.msra.mxu0 %v1265
        %1280 = vmatprep.subr.bf16.mxu0 0
        %1281 = vmatpush1.bf16.msra.mxu0 %v1266
        %1282 = vmatprep.subr.bf16.mxu0 0
        %1283 = vmatpush1.bf16.msra.mxu0 %v1267
        %1284 = vmatprep.subr.bf16.mxu0 0
        %1285 = vmatpush1.bf16.msra.mxu0 0
        %1286 = vmatprep.subr.bf16.mxu0 0
        %1287 = vmatpush1.bf16.msra.mxu0 0
        %1288 = vmatprep.subr.bf16.mxu0 0
        %1289 = vmatpush1.bf16.msra.mxu0 0
        %1290 = vmatprep.subr.bf16.mxu0 0
        %1291 = vmatpush1.bf16.msra.mxu0 0
        %1292 = vmatprep.subr.bf16.mxu0 0
        %1293 = vmatpush1.bf16.msra.mxu0 0
        %1294 = vmatprep.subr.bf16.mxu0 0
        %1295 = vmatpush1.bf16.msra.mxu0 0
        %1296 = vmatprep.subr.bf16.mxu0 0
        %1297 = vmatpush1.bf16.msra.mxu0 0
        %1298 = vmatprep.subr.bf16.mxu0 0
        %1299 = vmatpush1.bf16.msra.mxu0 0
        %1300 = vmatprep.mubr.bf16.mxu0 0
        %1301 = vmatmul.mubr.bf16.gmra.mrb[0].mxu0 %v658
        %v1302 = vpop.f32.mrb[0].mxu0
        %v1303 = vadd.f32 0.0, %v1302
        %v1304 = vpop.f32.mrb[0].mxu0
        %v1305 = vpop.f32.mrb[0].mxu0
        %v1306 = vadd.f32 0.0, %v1305
        %v1307 = vpop.f32.mrb[0].mxu0
        %1308 = vmatprep.mubr.bf16.mxu0 0
        %1309 = vmatmul.mubr.bf16.gmra.mrb[0].mxu0 %v659
        %v1310 = vpop.f32.mrb[0].mxu0
        %v1311 = vadd.f32 0.0, %v1310
        %v1312 = vpop.f32.mrb[0].mxu0
        %v1313 = vpop.f32.mrb[0].mxu0
        %v1314 = vadd.f32 0.0, %v1313
        %v1315 = vpop.f32.mrb[0].mxu0
        %1316 = vmatprep.mubr.bf16.mxu0 0
        %1317 = vmatmul.mubr.bf16.gmra.mrb[0].mxu0 %v660
        %v1318 = vpop.f32.mrb[0].mxu0
        %v1319 = vadd.f32 0.0, %v1318
        %v1320 = vpop.f32.mrb[0].mxu0
        %v1321 = vpop.f32.mrb[0].mxu0
        %v1322 = vadd.f32 0.0, %v1321
        %v1323 = vpop.f32.mrb[0].mxu0
        %1324 = vmatprep.mubr.bf16.mxu0 0
        %1325 = vmatmul.mubr.bf16.gmra.mrb[0].mxu0 %v661
        %v1326 = vpop.f32.mrb[0].mxu0
        %v1327 = vadd.f32 0.0, %v1326
        %v1328 = vpop.f32.mrb[0].mxu0
        %v1329 = vpop.f32.mrb[0].mxu0
        %v1330 = vadd.f32 0.0, %v1329
        %v1331 = vpop.f32.mrb[0].mxu0
        %1332 = vmatprep.mubr.bf16.mxu0 0
        %1333 = vmatmul.mubr.bf16.gmra.mrb[0].mxu0 %v662
        %v1334 = vpop.f32.mrb[0].mxu0
        %v1335 = vadd.f32 0.0, %v1334
        %v1336 = vpop.f32.mrb[0].mxu0
        %v1337 = vpop.f32.mrb[0].mxu0
        %v1338 = vadd.f32 0.0, %v1337
        %v1339 = vpop.f32.mrb[0].mxu0
        %1340 = vmatprep.mubr.bf16.mxu0 0
        %1341 = vmatmul.mubr.bf16.gmra.mrb[0].mxu0 %v663
        %v1342 = vpop.f32.mrb[0].mxu0
        %v1343 = vadd.f32 0.0, %v1342
        %v1344 = vpop.f32.mrb[0].mxu0
        %v1345 = vpop.f32.mrb[0].mxu0
        %v1346 = vadd.f32 0.0, %v1345
        %v1347 = vpop.f32.mrb[0].mxu0
        %1348 = vmatprep.mubr.bf16.mxu0 0
        %1349 = vmatmul.mubr.bf16.gmra.mrb[0].mxu0 %v664
        %v1350 = vpop.f32.mrb[0].mxu0
        %v1351 = vadd.f32 0.0, %v1350
        %v1352 = vpop.f32.mrb[0].mxu0
        %v1353 = vpop.f32.mrb[0].mxu0
        %v1354 = vadd.f32 0.0, %v1353
        %v1355 = vpop.f32.mrb[0].mxu0
        %1356 = vmatprep.mubr.bf16.mxu0 0
        %1357 = vmatmul.mubr.bf16.gmra.mrb[0].mxu0 %v665
        %v1358 = vpop.f32.mrb[0].mxu0
        %v1359 = vadd.f32 0.0, %v1358
        %v1360 = vpop.f32.mrb[0].mxu0
        %v1361 = vpop.f32.mrb[0].mxu0
        %v1362 = vadd.f32 0.0, %v1361
        %v1363 = vpop.f32.mrb[0].mxu0
        %1364 = vdwg.mxu0
        %v1365 = vpack.c.bf16 %v1306, %v1303
        %v1366 = vpack.c.bf16 %v1314, %v1311
        %v1367 = vpack.c.bf16 %v1322, %v1319
        %v1368 = vpack.c.bf16 %v1330, %v1327
        %v1369 = vpack.c.bf16 %v1338, %v1335
        %v1370 = vpack.c.bf16 %v1346, %v1343
        %v1371 = vpack.c.bf16 %v1354, %v1351
        %v1372 = vpack.c.bf16 %v1362, %v1359
        %v1373 = vld [vmem:[#allocation12] sm:$0xf]
        %v1374 = vld [vmem:[#allocation12 + $0x4] sm:$0xf]
        %v1375 = vld [vmem:[#allocation12 + $0x8] sm:$0xf]
        %v1376 = vld [vmem:[#allocation12 + $0xc] sm:$0xf]
        %v1377 = vld [vmem:[#allocation12 + $0x10] sm:$0xf]
        %v1378 = vld [vmem:[#allocation12 + $0x14] sm:$0xf]
        %v1379 = vld [vmem:[#allocation12 + $0x18] sm:$0xf]
        %v1380 = vld [vmem:[#allocation12 + $0x1c] sm:$0xf]
        %v1381 = vld [vmem:[#allocation12 + $0x20] sm:$0xf]
        %v1382 = vld [vmem:[#allocation12 + $0x24] sm:$0xf]
        %v1383 = vld [vmem:[#allocation12 + $0x28] sm:$0xf]
        %v1384 = vld [vmem:[#allocation12 + $0x2c] sm:$0xf]
        %v1385 = vld [vmem:[#allocation12 + $0x30] sm:$0xf]
        %v1386 = vld [vmem:[#allocation12 + $0x34] sm:$0xf]
        %v1387 = vld [vmem:[#allocation12 + $0x38] sm:$0xf]
        %v1388 = vld [vmem:[#allocation12 + $0x3c] sm:$0xf]
        %v1389 = vld [vmem:[%s8] sm:$0x1]
        %v1391 = vlaneseq
        %v1392 = vshrl.u32 %v1391, 7
        %v1393 = vsub.s32 0, %v1392
        %v1394 = vrot.slane %v1389, %v1393
        %v1412 = vunpack.c.l.b16 %v1373
        %v1413 = vunpack.c.l.b16 %v1374
        %v1414 = vunpack.c.l.b16 %v1375
        %v1415 = vunpack.c.l.b16 %v1376
        %v1416 = vunpack.c.l.b16 %v1377
        %v1417 = vunpack.c.l.b16 %v1378
        %v1418 = vunpack.c.l.b16 %v1379
        %v1419 = vunpack.c.l.b16 %v1380
        %v1420 = vunpack.c.l.b16 %v1381
        %v1421 = vunpack.c.l.b16 %v1382
        %v1422 = vunpack.c.l.b16 %v1383
        %v1423 = vunpack.c.l.b16 %v1384
        %v1424 = vunpack.c.l.b16 %v1385
        %v1425 = vunpack.c.l.b16 %v1386
        %v1426 = vunpack.c.l.b16 %v1387
        %v1427 = vunpack.c.l.b16 %v1388
        %v1428 = vpack.c.b16 %v1413, %v1412
        %v1429 = vpack.c.b16 %v1415, %v1414
        %v1430 = vpack.c.b16 %v1417, %v1416
        %v1431 = vpack.c.b16 %v1419, %v1418
        %v1432 = vpack.c.b16 %v1421, %v1420
        %v1433 = vpack.c.b16 %v1423, %v1422
        %v1434 = vpack.c.b16 %v1425, %v1424
        %v1435 = vpack.c.b16 %v1427, %v1426
        %1444 = vmatprep.subr.bf16.mxu0 0
        %1445 = vmatpush1.bf16.msra.mxu0 %v1428
        %1446 = vmatprep.subr.bf16.mxu0 0
        %1447 = vmatpush1.bf16.msra.mxu0 %v1429
        %1448 = vmatprep.subr.bf16.mxu0 0
        %1449 = vmatpush1.bf16.msra.mxu0 %v1430
        %1450 = vmatprep.subr.bf16.mxu0 0
        %1451 = vmatpush1.bf16.msra.mxu0 %v1431
        %1452 = vmatprep.subr.bf16.mxu0 0
        %1453 = vmatpush1.bf16.msra.mxu0 %v1432
        %1454 = vmatprep.subr.bf16.mxu0 0
        %1455 = vmatpush1.bf16.msra.mxu0 %v1433
        %1456 = vmatprep.subr.bf16.mxu0 0
        %1457 = vmatpush1.bf16.msra.mxu0 %v1434
        %1458 = vmatprep.subr.bf16.mxu0 0
        %1459 = vmatpush1.bf16.msra.mxu0 %v1435
        %1460 = vmatprep.subr.bf16.mxu0 0
        %1461 = vmatpush1.bf16.msra.mxu0 0
        %1462 = vmatprep.subr.bf16.mxu0 0
        %1463 = vmatpush1.bf16.msra.mxu0 0
        %1464 = vmatprep.subr.bf16.mxu0 0
        %1465 = vmatpush1.bf16.msra.mxu0 0
        %1466 = vmatprep.subr.bf16.mxu0 0
        %1467 = vmatpush1.bf16.msra.mxu0 0
        %1468 = vmatprep.subr.bf16.mxu0 0
        %1469 = vmatpush1.bf16.msra.mxu0 0
        %1470 = vmatprep.subr.bf16.mxu0 0
        %1471 = vmatpush1.bf16.msra.mxu0 0
        %1472 = vmatprep.subr.bf16.mxu0 0
        %1473 = vmatpush1.bf16.msra.mxu0 0
        %1474 = vmatprep.subr.bf16.mxu0 0
        %1475 = vmatpush1.bf16.msra.mxu0 0
        %1476 = vmatprep.mubr.bf16.mxu0 0
        %1477 = vmatmul.mubr.bf16.gmra.mrb[0].mxu0 %v1365
        %v1478 = vpop.f32.mrb[0].mxu0
        %v1479 = vadd.f32 %v1394, %v1478
        %v1480 = vpop.f32.mrb[0].mxu0
        %v1481 = vpop.f32.mrb[0].mxu0
        %v1482 = vadd.f32 %v1394, %v1481
        %v1483 = vpop.f32.mrb[0].mxu0
        %1484 = vmatprep.mubr.bf16.mxu0 0
        %1485 = vmatmul.mubr.bf16.gmra.mrb[0].mxu0 %v1366
        %v1486 = vpop.f32.mrb[0].mxu0
        %v1487 = vadd.f32 %v1394, %v1486
        %v1488 = vpop.f32.mrb[0].mxu0
        %v1489 = vpop.f32.mrb[0].mxu0
        %v1490 = vadd.f32 %v1394, %v1489
        %v1491 = vpop.f32.mrb[0].mxu0
        %1492 = vmatprep.mubr.bf16.mxu0 0
        %1493 = vmatmul.mubr.bf16.gmra.mrb[0].mxu0 %v1367
        %v1494 = vpop.f32.mrb[0].mxu0
        %v1495 = vadd.f32 %v1394, %v1494
        %v1496 = vpop.f32.mrb[0].mxu0
        %v1497 = vpop.f32.mrb[0].mxu0
        %v1498 = vadd.f32 %v1394, %v1497
        %v1499 = vpop.f32.mrb[0].mxu0
        %1500 = vmatprep.mubr.bf16.mxu0 0
        %1501 = vmatmul.mubr.bf16.gmra.mrb[0].mxu0 %v1368
        %v1502 = vpop.f32.mrb[0].mxu0
        %v1503 = vadd.f32 %v1394, %v1502
        %v1504 = vpop.f32.mrb[0].mxu0
        %v1505 = vpop.f32.mrb[0].mxu0
        %v1506 = vadd.f32 %v1394, %v1505
        %v1507 = vpop.f32.mrb[0].mxu0
        %1508 = vmatprep.mubr.bf16.mxu0 0
        %1509 = vmatmul.mubr.bf16.gmra.mrb[0].mxu0 %v1369
        %v1510 = vpop.f32.mrb[0].mxu0
        %v1511 = vadd.f32 %v1394, %v1510
        %v1512 = vpop.f32.mrb[0].mxu0
        %v1513 = vpop.f32.mrb[0].mxu0
        %v1514 = vadd.f32 %v1394, %v1513
        %v1515 = vpop.f32.mrb[0].mxu0
        %1516 = vmatprep.mubr.bf16.mxu0 0
        %1517 = vmatmul.mubr.bf16.gmra.mrb[0].mxu0 %v1370
        %v1518 = vpop.f32.mrb[0].mxu0
        %v1519 = vadd.f32 %v1394, %v1518
        %v1520 = vpop.f32.mrb[0].mxu0
        %v1521 = vpop.f32.mrb[0].mxu0
        %v1522 = vadd.f32 %v1394, %v1521
        %v1523 = vpop.f32.mrb[0].mxu0
        %1524 = vmatprep.mubr.bf16.mxu0 0
        %1525 = vmatmul.mubr.bf16.gmra.mrb[0].mxu0 %v1371
        %v1526 = vpop.f32.mrb[0].mxu0
        %v1527 = vadd.f32 %v1394, %v1526
        %v1528 = vpop.f32.mrb[0].mxu0
        %v1529 = vpop.f32.mrb[0].mxu0
        %v1530 = vadd.f32 %v1394, %v1529
        %v1531 = vpop.f32.mrb[0].mxu0
        %1532 = vmatprep.mubr.bf16.mxu0 0
        %1533 = vmatmul.mubr.bf16.gmra.mrb[0].mxu0 %v1372
        %v1534 = vpop.f32.mrb[0].mxu0
        %v1535 = vadd.f32 %v1394, %v1534
        %v1536 = vpop.f32.mrb[0].mxu0
        %v1537 = vpop.f32.mrb[0].mxu0
        %v1538 = vadd.f32 %v1394, %v1537
        %v1539 = vpop.f32.mrb[0].mxu0
        %1540 = vdwg.mxu0
        %v1541 = vmax.f32 %v1479, 0.0
        %v1542 = vmax.f32 %v1482, 0.0
        %v1543 = vmax.f32 %v1487, 0.0
        %v1544 = vmax.f32 %v1490, 0.0
        %v1545 = vmax.f32 %v1495, 0.0
        %v1546 = vmax.f32 %v1498, 0.0
        %v1547 = vmax.f32 %v1503, 0.0
        %v1548 = vmax.f32 %v1506, 0.0
        %v1549 = vmax.f32 %v1511, 0.0
        %v1550 = vmax.f32 %v1514, 0.0
        %v1551 = vmax.f32 %v1519, 0.0
        %v1552 = vmax.f32 %v1522, 0.0
        %v1553 = vmax.f32 %v1527, 0.0
        %v1554 = vmax.f32 %v1530, 0.0
        %v1555 = vmax.f32 %v1535, 0.0
        %v1556 = vmax.f32 %v1538, 0.0
        %v1557 = vpack.c.bf16 %v1542, %v1541
        %v1558 = vpack.c.bf16 %v1544, %v1543
        %v1559 = vpack.c.bf16 %v1546, %v1545
        %v1560 = vpack.c.bf16 %v1548, %v1547
        %v1561 = vpack.c.bf16 %v1550, %v1549
        %v1562 = vpack.c.bf16 %v1552, %v1551
        %v1563 = vpack.c.bf16 %v1554, %v1553
        %v1564 = vpack.c.bf16 %v1556, %v1555
        %1565 = vmatprep.subr.bf16.mxu0 0
        %1566 = vmatpush1.bf16.msra.mxu0 %v1557
        %1567 = vmatprep.subr.bf16.mxu0 0
        %1568 = vmatpush1.bf16.msra.mxu0 %v1558
        %1569 = vmatprep.subr.bf16.mxu0 0
        %1570 = vmatpush1.bf16.msra.mxu0 %v1559
        %1571 = vmatprep.subr.bf16.mxu0 0
        %1572 = vmatpush1.bf16.msra.mxu0 %v1560
        %1573 = vmatprep.subr.bf16.mxu0 0
        %1574 = vmatpush1.bf16.msra.mxu0 %v1561
        %1575 = vmatprep.subr.bf16.mxu0 0
        %1576 = vmatpush1.bf16.msra.mxu0 %v1562
        %1577 = vmatprep.subr.bf16.mxu0 0
        %1578 = vmatpush1.bf16.msra.mxu0 %v1563
        %1579 = vmatprep.subr.bf16.mxu0 0
        %1580 = vmatpush1.bf16.msra.mxu0 %v1564
        %1581 = vmatprep.subr.bf16.mxu0 0
        %1582 = vmatpush1.bf16.msra.mxu0 0
        %1583 = vmatprep.subr.bf16.mxu0 0
        %1584 = vmatpush1.bf16.msra.mxu0 0
        %1585 = vmatprep.subr.bf16.mxu0 0
        %1586 = vmatpush1.bf16.msra.mxu0 0
        %1587 = vmatprep.subr.bf16.mxu0 0
        %1588 = vmatpush1.bf16.msra.mxu0 0
        %1589 = vmatprep.subr.bf16.mxu0 0
        %1590 = vmatpush1.bf16.msra.mxu0 0
        %1591 = vmatprep.subr.bf16.mxu0 0
        %1592 = vmatpush1.bf16.msra.mxu0 0
        %1593 = vmatprep.subr.bf16.mxu0 0
        %1594 = vmatpush1.bf16.msra.mxu0 0
        %1595 = vmatprep.subr.bf16.mxu0 0
        %1596 = vmatpush1.bf16.msra.mxu0 0
        %1597 = vmatprep.mubr.bf16.mxu0 0
        %1598 = vmatmul.mubr.bf16.gmra.mrb[0].mxu0 %v658
        %v1599 = vpop.f32.mrb[0].mxu0
        %v1600 = vadd.f32 0.0, %v1599
        %v1601 = vpop.f32.mrb[0].mxu0
        %v1602 = vpop.f32.mrb[0].mxu0
        %v1603 = vadd.f32 0.0, %v1602
        %v1604 = vpop.f32.mrb[0].mxu0
        %1605 = vmatprep.mubr.bf16.mxu0 0
        %1606 = vmatmul.mubr.bf16.gmra.mrb[0].mxu0 %v659
        %v1607 = vpop.f32.mrb[0].mxu0
        %v1608 = vadd.f32 0.0, %v1607
        %v1609 = vpop.f32.mrb[0].mxu0
        %v1610 = vpop.f32.mrb[0].mxu0
        %v1611 = vadd.f32 0.0, %v1610
        %v1612 = vpop.f32.mrb[0].mxu0
        %1613 = vmatprep.mubr.bf16.mxu0 0
        %1614 = vmatmul.mubr.bf16.gmra.mrb[0].mxu0 %v660
        %v1615 = vpop.f32.mrb[0].mxu0
        %v1616 = vadd.f32 0.0, %v1615
        %v1617 = vpop.f32.mrb[0].mxu0
        %v1618 = vpop.f32.mrb[0].mxu0
        %v1619 = vadd.f32 0.0, %v1618
        %v1620 = vpop.f32.mrb[0].mxu0
        %1621 = vmatprep.mubr.bf16.mxu0 0
        %1622 = vmatmul.mubr.bf16.gmra.mrb[0].mxu0 %v661
        %v1623 = vpop.f32.mrb[0].mxu0
        %v1624 = vadd.f32 0.0, %v1623
        %v1625 = vpop.f32.mrb[0].mxu0
        %v1626 = vpop.f32.mrb[0].mxu0
        %v1627 = vadd.f32 0.0, %v1626
        %v1628 = vpop.f32.mrb[0].mxu0
        %1629 = vmatprep.mubr.bf16.mxu0 0
        %1630 = vmatmul.mubr.bf16.gmra.mrb[0].mxu0 %v662
        %v1631 = vpop.f32.mrb[0].mxu0
        %v1632 = vadd.f32 0.0, %v1631
        %v1633 = vpop.f32.mrb[0].mxu0
        %v1634 = vpop.f32.mrb[0].mxu0
        %v1635 = vadd.f32 0.0, %v1634
        %v1636 = vpop.f32.mrb[0].mxu0
        %1637 = vmatprep.mubr.bf16.mxu0 0
        %1638 = vmatmul.mubr.bf16.gmra.mrb[0].mxu0 %v663
        %v1639 = vpop.f32.mrb[0].mxu0
        %v1640 = vadd.f32 0.0, %v1639
        %v1641 = vpop.f32.mrb[0].mxu0
        %v1642 = vpop.f32.mrb[0].mxu0
        %v1643 = vadd.f32 0.0, %v1642
        %v1644 = vpop.f32.mrb[0].mxu0
        %1645 = vmatprep.mubr.bf16.mxu0 0
        %1646 = vmatmul.mubr.bf16.gmra.mrb[0].mxu0 %v664
        %v1647 = vpop.f32.mrb[0].mxu0
        %v1648 = vadd.f32 0.0, %v1647
        %v1649 = vpop.f32.mrb[0].mxu0
        %v1650 = vpop.f32.mrb[0].mxu0
        %v1651 = vadd.f32 0.0, %v1650
        %v1652 = vpop.f32.mrb[0].mxu0
        %1653 = vmatprep.mubr.bf16.mxu0 0
        %1654 = vmatmul.mubr.bf16.gmra.mrb[0].mxu0 %v665
        %v1655 = vpop.f32.mrb[0].mxu0
        %v1656 = vadd.f32 0.0, %v1655
        %v1657 = vpop.f32.mrb[0].mxu0
        %v1658 = vpop.f32.mrb[0].mxu0
        %v1659 = vadd.f32 0.0, %v1658
        %v1660 = vpop.f32.mrb[0].mxu0
        %1661 = vdwg.mxu0
        %v1662 = vpack.c.bf16 %v1603, %v1600
        %v1663 = vpack.c.bf16 %v1611, %v1608
        %v1664 = vpack.c.bf16 %v1619, %v1616
        %v1665 = vpack.c.bf16 %v1627, %v1624
        %v1666 = vpack.c.bf16 %v1635, %v1632
        %v1667 = vpack.c.bf16 %v1643, %v1640
        %v1668 = vpack.c.bf16 %v1651, %v1648
        %v1669 = vpack.c.bf16 %v1659, %v1656
        %v1670 = vld [vmem:[#allocation13] sm:$0xf]
        %v1671 = vld [vmem:[#allocation13 + $0x4] sm:$0xf]
        %v1672 = vld [vmem:[#allocation13 + $0x8] sm:$0xf]
        %v1673 = vld [vmem:[#allocation13 + $0xc] sm:$0xf]
        %v1674 = vld [vmem:[#allocation13 + $0x10] sm:$0xf]
        %v1675 = vld [vmem:[#allocation13 + $0x14] sm:$0xf]
        %v1676 = vld [vmem:[#allocation13 + $0x18] sm:$0xf]
        %v1677 = vld [vmem:[#allocation13 + $0x1c] sm:$0xf]
        %v1678 = vld [vmem:[#allocation13 + $0x20] sm:$0xf]
        %v1679 = vld [vmem:[#allocation13 + $0x24] sm:$0xf]
        %v1680 = vld [vmem:[#allocation13 + $0x28] sm:$0xf]
        %v1681 = vld [vmem:[#allocation13 + $0x2c] sm:$0xf]
        %v1682 = vld [vmem:[#allocation13 + $0x30] sm:$0xf]
        %v1683 = vld [vmem:[#allocation13 + $0x34] sm:$0xf]
        %v1684 = vld [vmem:[#allocation13 + $0x38] sm:$0xf]
        %v1685 = vld [vmem:[#allocation13 + $0x3c] sm:$0xf]
        %v1686 = vld [vmem:[%s10] sm:$0x1]
        %v1688 = vlaneseq
        %v1689 = vshrl.u32 %v1688, 7
        %v1690 = vsub.s32 0, %v1689
        %v1691 = vrot.slane %v1686, %v1690
        %v1709 = vunpack.c.l.b16 %v1670
        %v1710 = vunpack.c.l.b16 %v1671
        %v1711 = vunpack.c.l.b16 %v1672
        %v1712 = vunpack.c.l.b16 %v1673
        %v1713 = vunpack.c.l.b16 %v1674
        %v1714 = vunpack.c.l.b16 %v1675
        %v1715 = vunpack.c.l.b16 %v1676
        %v1716 = vunpack.c.l.b16 %v1677
        %v1717 = vunpack.c.l.b16 %v1678
        %v1718 = vunpack.c.l.b16 %v1679
        %v1719 = vunpack.c.l.b16 %v1680
        %v1720 = vunpack.c.l.b16 %v1681
        %v1721 = vunpack.c.l.b16 %v1682
        %v1722 = vunpack.c.l.b16 %v1683
        %v1723 = vunpack.c.l.b16 %v1684
        %v1724 = vunpack.c.l.b16 %v1685
        %v1725 = vpack.c.b16 %v1710, %v1709
        %v1726 = vpack.c.b16 %v1712, %v1711
        %v1727 = vpack.c.b16 %v1714, %v1713
        %v1728 = vpack.c.b16 %v1716, %v1715
        %v1729 = vpack.c.b16 %v1718, %v1717
        %v1730 = vpack.c.b16 %v1720, %v1719
        %v1731 = vpack.c.b16 %v1722, %v1721
        %v1732 = vpack.c.b16 %v1724, %v1723
        %1741 = vmatprep.subr.bf16.mxu0 0
        %1742 = vmatpush1.bf16.msra.mxu0 %v1725
        %1743 = vmatprep.subr.bf16.mxu0 0
        %1744 = vmatpush1.bf16.msra.mxu0 %v1726
        %1745 = vmatprep.subr.bf16.mxu0 0
        %1746 = vmatpush1.bf16.msra.mxu0 %v1727
        %1747 = vmatprep.subr.bf16.mxu0 0
        %1748 = vmatpush1.bf16.msra.mxu0 %v1728
        %1749 = vmatprep.subr.bf16.mxu0 0
        %1750 = vmatpush1.bf16.msra.mxu0 %v1729
        %1751 = vmatprep.subr.bf16.mxu0 0
        %1752 = vmatpush1.bf16.msra.mxu0 %v1730
        %1753 = vmatprep.subr.bf16.mxu0 0
        %1754 = vmatpush1.bf16.msra.mxu0 %v1731
        %1755 = vmatprep.subr.bf16.mxu0 0
        %1756 = vmatpush1.bf16.msra.mxu0 %v1732
        %1757 = vmatprep.subr.bf16.mxu0 0
        %1758 = vmatpush1.bf16.msra.mxu0 0
        %1759 = vmatprep.subr.bf16.mxu0 0
        %1760 = vmatpush1.bf16.msra.mxu0 0
        %1761 = vmatprep.subr.bf16.mxu0 0
        %1762 = vmatpush1.bf16.msra.mxu0 0
        %1763 = vmatprep.subr.bf16.mxu0 0
        %1764 = vmatpush1.bf16.msra.mxu0 0
        %1765 = vmatprep.subr.bf16.mxu0 0
        %1766 = vmatpush1.bf16.msra.mxu0 0
        %1767 = vmatprep.subr.bf16.mxu0 0
        %1768 = vmatpush1.bf16.msra.mxu0 0
        %1769 = vmatprep.subr.bf16.mxu0 0
        %1770 = vmatpush1.bf16.msra.mxu0 0
        %1771 = vmatprep.subr.bf16.mxu0 0
        %1772 = vmatpush1.bf16.msra.mxu0 0
        %1773 = vmatprep.mubr.bf16.mxu0 0
        %1774 = vmatmul.mubr.bf16.gmra.mrb[0].mxu0 %v1662
        %v1775 = vpop.f32.mrb[0].mxu0
        %v1776 = vadd.f32 %v1691, %v1775
        %v1777 = vpop.f32.mrb[0].mxu0
        %v1778 = vpop.f32.mrb[0].mxu0
        %v1779 = vadd.f32 %v1691, %v1778
        %v1780 = vpop.f32.mrb[0].mxu0
        %1781 = vmatprep.mubr.bf16.mxu0 0
        %1782 = vmatmul.mubr.bf16.gmra.mrb[0].mxu0 %v1663
        %v1783 = vpop.f32.mrb[0].mxu0
        %v1784 = vadd.f32 %v1691, %v1783
        %v1785 = vpop.f32.mrb[0].mxu0
        %v1786 = vpop.f32.mrb[0].mxu0
        %v1787 = vadd.f32 %v1691, %v1786
        %v1788 = vpop.f32.mrb[0].mxu0
        %1789 = vmatprep.mubr.bf16.mxu0 0
        %1790 = vmatmul.mubr.bf16.gmra.mrb[0].mxu0 %v1664
        %v1791 = vpop.f32.mrb[0].mxu0
        %v1792 = vadd.f32 %v1691, %v1791
        %v1793 = vpop.f32.mrb[0].mxu0
        %v1794 = vpop.f32.mrb[0].mxu0
        %v1795 = vadd.f32 %v1691, %v1794
        %v1796 = vpop.f32.mrb[0].mxu0
        %1797 = vmatprep.mubr.bf16.mxu0 0
        %1798 = vmatmul.mubr.bf16.gmra.mrb[0].mxu0 %v1665
        %v1799 = vpop.f32.mrb[0].mxu0
        %v1800 = vadd.f32 %v1691, %v1799
        %v1801 = vpop.f32.mrb[0].mxu0
        %v1802 = vpop.f32.mrb[0].mxu0
        %v1803 = vadd.f32 %v1691, %v1802
        %v1804 = vpop.f32.mrb[0].mxu0
        %1805 = vmatprep.mubr.bf16.mxu0 0
        %1806 = vmatmul.mubr.bf16.gmra.mrb[0].mxu0 %v1666
        %v1807 = vpop.f32.mrb[0].mxu0
        %v1808 = vadd.f32 %v1691, %v1807
        %v1809 = vpop.f32.mrb[0].mxu0
        %v1810 = vpop.f32.mrb[0].mxu0
        %v1811 = vadd.f32 %v1691, %v1810
        %v1812 = vpop.f32.mrb[0].mxu0
        %1813 = vmatprep.mubr.bf16.mxu0 0
        %1814 = vmatmul.mubr.bf16.gmra.mrb[0].mxu0 %v1667
        %v1815 = vpop.f32.mrb[0].mxu0
        %v1816 = vadd.f32 %v1691, %v1815
        %v1817 = vpop.f32.mrb[0].mxu0
        %v1818 = vpop.f32.mrb[0].mxu0
        %v1819 = vadd.f32 %v1691, %v1818
        %v1820 = vpop.f32.mrb[0].mxu0
        %1821 = vmatprep.mubr.bf16.mxu0 0
        %1822 = vmatmul.mubr.bf16.gmra.mrb[0].mxu0 %v1668
        %v1823 = vpop.f32.mrb[0].mxu0
        %v1824 = vadd.f32 %v1691, %v1823
        %v1825 = vpop.f32.mrb[0].mxu0
        %v1826 = vpop.f32.mrb[0].mxu0
        %v1827 = vadd.f32 %v1691, %v1826
        %v1828 = vpop.f32.mrb[0].mxu0
        %1829 = vmatprep.mubr.bf16.mxu0 0
        %1830 = vmatmul.mubr.bf16.gmra.mrb[0].mxu0 %v1669
        %v1831 = vpop.f32.mrb[0].mxu0
        %v1832 = vadd.f32 %v1691, %v1831
        %v1833 = vpop.f32.mrb[0].mxu0
        %v1834 = vpop.f32.mrb[0].mxu0
        %v1835 = vadd.f32 %v1691, %v1834
        %v1836 = vpop.f32.mrb[0].mxu0
        %1837 = vdwg.mxu0
        %v1838 = vmax.f32 %v1776, 0.0
        %v1839 = vmax.f32 %v1779, 0.0
        %v1840 = vmax.f32 %v1784, 0.0
        %v1841 = vmax.f32 %v1787, 0.0
        %v1842 = vmax.f32 %v1792, 0.0
        %v1843 = vmax.f32 %v1795, 0.0
        %v1844 = vmax.f32 %v1800, 0.0
        %v1845 = vmax.f32 %v1803, 0.0
        %v1846 = vmax.f32 %v1808, 0.0
        %v1847 = vmax.f32 %v1811, 0.0
        %v1848 = vmax.f32 %v1816, 0.0
        %v1849 = vmax.f32 %v1819, 0.0
        %v1850 = vmax.f32 %v1824, 0.0
        %v1851 = vmax.f32 %v1827, 0.0
        %v1852 = vmax.f32 %v1832, 0.0
        %v1853 = vmax.f32 %v1835, 0.0
        %s1854 = sld [smem:[#allocation3 + %s44]]
        %v1855 = vlaneseq
        %v1856 = vshrl.u32 %v1855, 7
        %v1857 = vadd.s32 %v1856, 8
        %v1858 = vadd.s32 %v1856, 16
        %v1859 = vadd.s32 %v1856, 24
        %v1860 = vadd.s32 %v1856, 32
        %v1861 = vadd.s32 %v1856, 40
        %v1862 = vadd.s32 %v1856, 48
        %v1863 = vadd.s32 %v1856, 56
        %v1864 = vadd.s32 %v1856, 64
        %v1865 = vadd.s32 %v1856, 72
        %v1866 = vadd.s32 %v1856, 80
        %v1867 = vadd.s32 %v1856, 88
        %v1868 = vadd.s32 %v1856, 96
        %v1869 = vadd.s32 %v1856, 104
        %v1870 = vadd.s32 %v1856, 112
        %v1871 = vadd.s32 %v1856, 120
        %v1872 = vstv %s1854
        %vm1873 = vcmp.lt.s32.totalorder %v1856, %v1872
        %vm1874 = vcmp.lt.s32.totalorder %v1857, %v1872
        %vm1875 = vcmp.lt.s32.totalorder %v1858, %v1872
        %vm1876 = vcmp.lt.s32.totalorder %v1859, %v1872
        %vm1877 = vcmp.lt.s32.totalorder %v1860, %v1872
        %vm1878 = vcmp.lt.s32.totalorder %v1861, %v1872
        %vm1879 = vcmp.lt.s32.totalorder %v1862, %v1872
        %vm1880 = vcmp.lt.s32.totalorder %v1863, %v1872
        %vm1881 = vcmp.lt.s32.totalorder %v1864, %v1872
        %vm1882 = vcmp.lt.s32.totalorder %v1865, %v1872
        %vm1883 = vcmp.lt.s32.totalorder %v1866, %v1872
        %vm1884 = vcmp.lt.s32.totalorder %v1867, %v1872
        %vm1885 = vcmp.lt.s32.totalorder %v1868, %v1872
        %vm1886 = vcmp.lt.s32.totalorder %v1869, %v1872
        %vm1887 = vcmp.lt.s32.totalorder %v1870, %v1872
        %vm1888 = vcmp.lt.s32.totalorder %v1871, %v1872
        %v1889 = vsel %vm1873, %v1838, 0.0
        %v1890 = vsel %vm1874, %v1839, 0.0
        %v1891 = vsel %vm1875, %v1840, 0.0
        %v1892 = vsel %vm1876, %v1841, 0.0
        %v1893 = vsel %vm1877, %v1842, 0.0
        %v1894 = vsel %vm1878, %v1843, 0.0
        %v1895 = vsel %vm1879, %v1844, 0.0
        %v1896 = vsel %vm1880, %v1845, 0.0
        %v1897 = vsel %vm1881, %v1846, 0.0
        %v1898 = vsel %vm1882, %v1847, 0.0
        %v1899 = vsel %vm1883, %v1848, 0.0
        %v1900 = vsel %vm1884, %v1849, 0.0
        %v1901 = vsel %vm1885, %v1850, 0.0
        %v1902 = vsel %vm1886, %v1851, 0.0
        %v1903 = vsel %vm1887, %v1852, 0.0
        %v1904 = vsel %vm1888, %v1853, 0.0
        %v1905 = vadd.f32 %v1889, %v1890
        %v1906 = vadd.f32 %v1905, %v1891
        %v1907 = vadd.f32 %v1906, %v1892
        %v1908 = vadd.f32 %v1907, %v1893
        %v1909 = vadd.f32 %v1908, %v1894
        %v1910 = vadd.f32 %v1909, %v1895
        %v1911 = vadd.f32 %v1910, %v1896
        %v1912 = vadd.f32 %v1911, %v1897
        %v1913 = vadd.f32 %v1912, %v1898
        %v1914 = vadd.f32 %v1913, %v1899
        %v1915 = vadd.f32 %v1914, %v1900
        %v1916 = vadd.f32 %v1915, %v1901
        %v1917 = vadd.f32 %v1916, %v1902
        %v1918 = vadd.f32 %v1917, %v1903
        %v1919 = vadd.f32 %v1918, %v1904
        %v1920 = vrot.slane %v1919, 4
        %v1921 = vadd.f32 %v1919, %v1920
        %v1922 = vrot.slane %v1921, 2
        %v1923 = vadd.f32 %v1921, %v1922
        %v1924 = vrot.slane %v1923, 1
        %v1925 = vadd.f32 %v1923, %v1924
        %s1926 = scvt.s32.f32 %s1854
        %v1927 = vstv %s1926
        %v1928 = vrcp.pop %v1927
        %v1929 = vmul.f32 %v1925, %v1928
        %1930 = vst [vmem:[%s584] sm:$0x1] %v1929
        %v1931 = vpack.c.bf16 %v1929, %v1929
        %v1932 = vld [vmem:[#allocation15] sm:$0xf]
        %v1933 = vld [vmem:[#allocation15 + $0x4] sm:$0xf]
        %v1934 = vld [vmem:[#allocation15 + $0x8] sm:$0xf]
        %v1935 = vld [vmem:[#allocation15 + $0xc] sm:$0xf]
        %v1936 = vld [vmem:[#allocation15 + $0x10] sm:$0xf]
        %v1937 = vld [vmem:[#allocation15 + $0x14] sm:$0xf]
        %v1938 = vld [vmem:[#allocation15 + $0x18] sm:$0xf]
        %v1939 = vld [vmem:[#allocation15 + $0x1c] sm:$0xf]
        %v1940 = vld [vmem:[#allocation15 + $0x20] sm:$0xf]
        %v1941 = vld [vmem:[#allocation15 + $0x24] sm:$0xf]
        %v1942 = vld [vmem:[#allocation15 + $0x28] sm:$0xf]
        %v1943 = vld [vmem:[#allocation15 + $0x2c] sm:$0xf]
        %v1944 = vld [vmem:[#allocation15 + $0x30] sm:$0xf]
        %v1945 = vld [vmem:[#allocation15 + $0x34] sm:$0xf]
        %v1946 = vld [vmem:[#allocation15 + $0x38] sm:$0xf]
        %v1947 = vld [vmem:[#allocation15 + $0x3c] sm:$0xf]
        %v1948 = vld [vmem:[%s12] sm:$0x1]
        %v1965 = vunpack.c.l.b16 %v1932
        %v1966 = vunpack.c.l.b16 %v1933
        %v1967 = vunpack.c.l.b16 %v1934
        %v1968 = vunpack.c.l.b16 %v1935
        %v1969 = vunpack.c.l.b16 %v1936
        %v1970 = vunpack.c.l.b16 %v1937
        %v1971 = vunpack.c.l.b16 %v1938
        %v1972 = vunpack.c.l.b16 %v1939
        %v1973 = vunpack.c.l.b16 %v1940
        %v1974 = vunpack.c.l.b16 %v1941
        %v1975 = vunpack.c.l.b16 %v1942
        %v1976 = vunpack.c.l.b16 %v1943
        %v1977 = vunpack.c.l.b16 %v1944
        %v1978 = vunpack.c.l.b16 %v1945
        %v1979 = vunpack.c.l.b16 %v1946
        %v1980 = vunpack.c.l.b16 %v1947
        %v1981 = vpack.c.b16 %v1966, %v1965
        %v1982 = vpack.c.b16 %v1968, %v1967
        %v1983 = vpack.c.b16 %v1970, %v1969
        %v1984 = vpack.c.b16 %v1972, %v1971
        %v1985 = vpack.c.b16 %v1974, %v1973
        %v1986 = vpack.c.b16 %v1976, %v1975
        %v1987 = vpack.c.b16 %v1978, %v1977
        %v1988 = vpack.c.b16 %v1980, %v1979
        %1997 = vmatprep.subr.bf16.mxu0 0
        %1998 = vmatpush1.bf16.msra.mxu0 %v1981
        %1999 = vmatprep.subr.bf16.mxu0 0
        %2000 = vmatpush1.bf16.msra.mxu0 %v1982
        %2001 = vmatprep.subr.bf16.mxu0 0
        %2002 = vmatpush1.bf16.msra.mxu0 %v1983
        %2003 = vmatprep.subr.bf16.mxu0 0
        %2004 = vmatpush1.bf16.msra.mxu0 %v1984
        %2005 = vmatprep.subr.bf16.mxu0 0
        %2006 = vmatpush1.bf16.msra.mxu0 %v1985
        %2007 = vmatprep.subr.bf16.mxu0 0
        %2008 = vmatpush1.bf16.msra.mxu0 %v1986
        %2009 = vmatprep.subr.bf16.mxu0 0
        %2010 = vmatpush1.bf16.msra.mxu0 %v1987
        %2011 = vmatprep.subr.bf16.mxu0 0
        %2012 = vmatpush1.bf16.msra.mxu0 %v1988
        %2013 = vmatprep.subr.bf16.mxu0 0
        %2014 = vmatpush1.bf16.msra.mxu0 0
        %2015 = vmatprep.subr.bf16.mxu0 0
        %2016 = vmatpush1.bf16.msra.mxu0 0
        %2017 = vmatprep.subr.bf16.mxu0 0
        %2018 = vmatpush1.bf16.msra.mxu0 0
        %2019 = vmatprep.subr.bf16.mxu0 0
        %2020 = vmatpush1.bf16.msra.mxu0 0
        %2021 = vmatprep.subr.bf16.mxu0 0
        %2022 = vmatpush1.bf16.msra.mxu0 0
        %2023 = vmatprep.subr.bf16.mxu0 0
        %2024 = vmatpush1.bf16.msra.mxu0 0
        %2025 = vmatprep.subr.bf16.mxu0 0
        %2026 = vmatpush1.bf16.msra.mxu0 0
        %2027 = vmatprep.subr.bf16.mxu0 0
        %2028 = vmatpush1.bf16.msra.mxu0 0
        %2029 = vmatprep.mubr.bf16.mxu0 0
        %2030 = vmatmul.mubr.bf16.gmra.mrb[0].mxu0 %v1931
        %v2031 = vpop.f32.mrb[0].mxu0
        %v2032 = vadd.f32 %v1948, %v2031
        %v2033 = vpop.f32.mrb[0].mxu0
        %v2034 = vpop.f32.mrb[0].mxu0
        %v2035 = vpop.f32.mrb[0].mxu0
        %2036 = vdwg.mxu0
        %2037 = vst [vmem:[%s578] sm:$0x1] %v2032
        %s2038 = sand.u32 %s314, 1
        %s2039 = scalar_lea.sflag [#allocation6], %s2038
        %s2040 = sand.u32 %s314, 1
        %s2041 = scalar_lea.vmem [#allocation16], %s2040
        %s2042 = sand.u32 %s340, 1
        %s2043 = scalar_lea.sflag [#allocation18], %s2042
        %s2044 = sand.u32 %s340, 1
        %s2045 = scalar_lea.vmem [#allocation17], %s2044
        // Predicated region
        $region97: #{tpu_custom_call.1} parent=67 // pred_check
          %p2046 = pneg %p324
        $region98: #{tpu_custom_call.1} parent=67 // pred_check_branch
          %2048 = sbr.rel (%p2046) target = $region100
        $region99: #{tpu_custom_call.1} parent=67 // pred_region
          %s2050 = ssub.s32 16, 16
          %2051 = vsyncadd %s2039, %s2050
          %s2052 = smul.addr %s44, 16
          %s2053 = scalar_lea.hbm %s13, %s2052
          %s2055 = sshll.u32 %s2041, 4
          %s2056 = int_to_ptr.vmem [resolvable:$true] %s2055
          %2058 = dma.vmem_to_hbm [thread:$0]  %s2056, 16, %s2053, %s2039
        $region100: #{tpu_custom_call.1} parent=67 // pred_fallthru
          _
        // Predicated region
        $region101: #{tpu_custom_call.1} parent=67 // pred_check
          %p2059 = pneg %p350
        $region102: #{tpu_custom_call.1} parent=67 // pred_check_branch
          %2061 = sbr.rel (%p2059) target = $region104
        $region103: #{tpu_custom_call.1} parent=67 // pred_region
          %s2063 = ssub.s32 16, 16
          %2064 = vsyncadd %s2043, %s2063
          %s2065 = smul.addr %s44, 16
          %s2066 = scalar_lea.hbm %s14, %s2065
          %s2068 = sshll.u32 %s2045, 4
          %s2069 = int_to_ptr.vmem [resolvable:$true] %s2068
          %2071 = dma.vmem_to_hbm [thread:$0]  %s2069, 16, %s2066, %s2043
        $region104: #{tpu_custom_call.1} parent=67 // pred_fallthru
          _
      $region68: #{tpu_custom_call.1} parent=5 // pred_fallthru
        _
      %p2072 = scmp.le.s32.totalorder 2, %s39
      // Predicated region
      $region105: #{tpu_custom_call.1} parent=5 // pred_check
        %p2073 = pneg %p2072
      $region106: #{tpu_custom_call.1} parent=5 // pred_check_branch
        %2075 = sbr.rel (%p2073) target = $region108
      $region107: #{tpu_custom_call.1} parent=5 // pred_region
        %s2076 = ssub.s32 %s39, 2
        // Predicated region
        $region109: #{tpu_custom_call.1} parent=107 // pred_check
          %p2077 = pneg %p330
        $region110: #{tpu_custom_call.1} parent=107 // pred_check_branch
          %2079 = sbr.rel (%p2077) target = $region112
        $region111: #{tpu_custom_call.1} parent=107 // pred_region
          %s2080 = sand.u32 %s315, 1
          %s2081 = scalar_lea.sflag [#allocation6], %s2080
          %s2082 = sand.u32 %s315, 1
          %s2083 = scalar_lea.vmem [#allocation16], %s2082
          %2084 = dma.done %s2081, 16
        $region112: #{tpu_custom_call.1} parent=107 // pred_fallthru
          _
        // Predicated region
        $region113: #{tpu_custom_call.1} parent=107 // pred_check
          %p2085 = pneg %p356
        $region114: #{tpu_custom_call.1} parent=107 // pred_check_branch
          %2087 = sbr.rel (%p2085) target = $region116
        $region115: #{tpu_custom_call.1} parent=107 // pred_region
          %s2088 = sand.u32 %s341, 1
          %s2089 = scalar_lea.sflag [#allocation18], %s2088
          %s2090 = sand.u32 %s341, 1
          %s2091 = scalar_lea.vmem [#allocation17], %s2090
          %2092 = dma.done %s2089, 16
        $region116: #{tpu_custom_call.1} parent=107 // pred_fallthru
          _
      $region108: #{tpu_custom_call.1} parent=5 // pred_fallthru
        _
    $region6: #{tpu_custom_call.1} parent=1 // loop_footer
      %s43 = sadd.s32 1, %s39
    $region7: #{tpu_custom_call.1} parent=1 // loop_footer_branch
      %38 = sbr.rel target = $region3
    $region8: #{tpu_custom_call.1} parent=1 // loop_exit
      _
    %2093 = vsyncpa [#allocation5], 1
    %s2094 = scalar_lea.sflag [#allocation5], 1
    %2095 = vsyncpa %s2094, 1
    %2096 = vsyncpa [#allocation8], 1
    %s2097 = scalar_lea.sflag [#allocation8], 1
    %2098 = vsyncpa %s2097, 1
    %2099 = vsyncpa [#allocation11], 1
    %2100 = vsyncpa [#allocation14], 1
    %2101 = vsyncpa [#allocation6], 1
    %s2102 = scalar_lea.sflag [#allocation6], 1
    %2103 = vsyncpa %s2102, 1
    %2104 = vsyncpa [#allocation18], 1
    %s2105 = scalar_lea.sflag [#allocation18], 1
    %2106 = vsyncpa %s2105, 1

</llo_original>
